<compile_context>
chip_gen: v6e
topology: v6e:2x2x1
jax: 0.10.0
libtpu: 0.0.40
codegen_flags: <defaults>
</compile_context>

<pallas_src>
import functools

import jax
import jax.numpy as jnp
from jax import lax
from jax.experimental import pallas as pl
from jax.experimental.pallas import tpu as pltpu


def _round_up(n, m):
    return ((n + m - 1) // m) * m


def _gelu_exact(x):
    # PyTorch nn.GELU default (erf-based, not tanh-approx).
    return 0.5 * x * (1.0 + jax.lax.erf(x * 0.7071067811865476))


def _softmax(z, axis):
    zm = z - jnp.max(z, axis=axis, keepdims=True)
    e = jnp.exp(zm)
    return e / jnp.sum(e, axis=axis, keepdims=True)


def _log_softmax(z, axis):
    zm = z - jnp.max(z, axis=axis, keepdims=True)
    return zm - jnp.log(jnp.sum(jnp.exp(zm), axis=axis, keepdims=True))


# ----------------------------- fused kernel -------------------------------- #

def fused_densenet_kernel(
    img_ref, spot_ref,                       # per-batch-tile inputs (bf16)
    enc_w_ref, enc_b_ref,                    # encoder: pool-folded weight + bias
    ip_w1_ref, ip_w2_ref, ip_vec_ref,        # image projection head
    sp_w1_ref, sp_w2_ref, sp_vec_ref,        # spot projection head
    loss_ref,                                # (1, 1) output
    img_emb_ref, spot_emb_ref,               # (B, P) f32 VMEM scratch (resident)
    *, temperature, batch, tile_b,
):
    i = pl.program_id(0)

    # ---- stand-in encoder: mean-pool folded into one MXU matmul ------------ #
    # img tile: (TB, C*HW) bf16, enc_w: (C*HW, F_pad) bf16 (pre-scaled by 1/HW).
    feats = (jnp.dot(img_ref[...], enc_w_ref[...],
                     preferred_element_type=jnp.float32) + enc_b_ref[...])

    # ---- ProjectionHead: Linear -> GELU -> Linear -> (+res) -> LayerNorm --- #
    def project(x, w1_ref, w2_ref, vec_ref):
        b1 = vec_ref[0:1, :]
        b2 = vec_ref[1:2, :]
        gamma = vec_ref[2:3, :]
        beta = vec_ref[3:4, :]
        projected = (jnp.dot(x.astype(jnp.bfloat16), w1_ref[...],
                             preferred_element_type=jnp.float32) + b1)
        h = _gelu_exact(projected)
        h = (jnp.dot(h.astype(jnp.bfloat16), w2_ref[...],
                     preferred_element_type=jnp.float32) + b2)
        h = h + projected                              # dropout == identity (eval)
        mu = jnp.mean(h, axis=-1, keepdims=True)
        var = jnp.mean((h - mu) ** 2, axis=-1, keepdims=True)
        return (h - mu) * jax.lax.rsqrt(var + 1e-5) * gamma + beta

    row0 = pl.multiple_of(i * tile_b, tile_b)
    img_emb_ref[pl.ds(row0, tile_b), :] = project(feats, ip_w1_ref, ip_w2_ref, ip_vec_ref)
    spot_emb_ref[pl.ds(row0, tile_b), :] = project(spot_ref[...], sp_w1_ref, sp_w2_ref, sp_vec_ref)

    # ---- CLIP loss on the last grid step (embeddings complete in VMEM) ----- #
    # Kept entirely in f32: the B x B matmuls are tiny and this avoids bf16
    # drift in logits / similarity targets vs. the PyTorch reference.
    @pl.when(i == pl.num_programs(0) - 1)
    def _compute_loss():
        img_e = img_emb_ref[...]
        spot_e = spot_emb_ref[...]
        dims = (((1,), (1,)), ((), ()))                # contract last dims: A @ B.T
        logits = lax.dot_general(spot_e, img_e, dims,
                                 preferred_element_type=jnp.float32) / temperature
        img_sim = lax.dot_general(img_e, img_e, dims,
                                  preferred_element_type=jnp.float32)
        spot_sim = lax.dot_general(spot_e, spot_e, dims,
                                   preferred_element_type=jnp.float32)
        # Matches the module: softmax((img_sim + spot_sim)/2 * temperature, dim=-1)
        targets = _softmax((img_sim + spot_sim) * (0.5 * temperature), axis=-1)

        # spots_loss.sum()  = sum(-targets * log_softmax(logits,  dim=-1))
        # images_loss.sum() = sum(-targets * log_softmax(logits, axis=0))
        #   (identical to sum(-targets.T * log_softmax(logits.T, dim=-1))
        #    without materializing any transpose)
        ce = -targets * (_log_softmax(logits, axis=-1) + _log_softmax(logits, axis=0))
        loss_ref[...] = jnp.sum(ce, keepdims=True) * (0.5 / batch)


# ----------------------------- params -------------------------------------- #

def init_params(key, channels, image_embedding, spot_embedding, projection_dim):
    ks = jax.random.split(key, 5)

    def linear(k, d_in, d_out):
        w = jax.random.normal(k, (d_in, d_out), jnp.float32) / jnp.sqrt(float(d_in))
        b = jnp.zeros((1, d_out), jnp.float32)
        return w, b

    enc_w, enc_b = linear(ks[0], channels, image_embedding)

    def proj_head(k1, k2, d_in, d_proj):
        w1, b1 = linear(k1, d_in, d_proj)
        w2, b2 = linear(k2, d_proj, d_proj)
        return dict(w1=w1, b1=b1, w2=w2, b2=b2,
                    gamma=jnp.ones((1, d_proj), jnp.float32),
                    beta=jnp.zeros((1, d_proj), jnp.float32))

    return dict(
        enc_w=enc_w, enc_b=enc_b,
        image_proj=proj_head(ks[1], ks[2], image_embedding, projection_dim),
        spot_proj=proj_head(ks[3], ks[4], spot_embedding, projection_dim),
    )


# ----------------------- one-time weight preparation ------------------------ #

def prepare_weights(params, channels, height, width):
    """Fold the mean-pool into the encoder weight, pad feature widths to 128,
    cast matmul operands to bf16 and pack the small per-head vectors.
    Call once and reuse across forward calls (keeps the HWx weight-prep XLA ops
    out of the steady-state step)."""
    del channels  # shapes are taken from the params themselves
    HW = height * width
    F = params["enc_w"].shape[1]
    S = params["spot_proj"]["w1"].shape[0]
    F_pad = _round_up(F, 128)
    S_pad = _round_up(S, 128)

    # fold 1/HW mean-pool into a (C*HW, F_pad) weight
    enc_w_tiled = jnp.repeat(params["enc_w"].astype(jnp.float32) / float(HW), HW, axis=0)
    enc_w_tiled = jnp.pad(enc_w_tiled, ((0, 0), (0, F_pad - F))).astype(jnp.bfloat16)
    enc_b = jnp.pad(params["enc_b"], ((0, 0), (0, F_pad - F)))           # f32

    def head(p, d_in_pad):
        w1 = jnp.pad(p["w1"], ((0, d_in_pad - p["w1"].shape[0]), (0, 0))).astype(jnp.bfloat16)
        w2 = p["w2"].astype(jnp.bfloat16)
        vec = jnp.concatenate([p["b1"], p["b2"], p["gamma"], p["beta"]], axis=0)  # (4, P) f32
        return w1, w2, vec

    ip_w1, ip_w2, ip_vec = head(params["image_proj"], F_pad)
    sp_w1, sp_w2, sp_vec = head(params["spot_proj"], S_pad)

    return dict(enc_w=enc_w_tiled, enc_b=enc_b,
                ip_w1=ip_w1, ip_w2=ip_w2, ip_vec=ip_vec,
                sp_w1=sp_w1, sp_w2=sp_w2, sp_vec=sp_vec)


# ----------------------------- wrapper -------------------------------------- #

def densenet_forward(image, reduced_expression, prep, temperature=1.0, tile_b=256):
    """prep = prepare_weights(params, C, H, W) - prepared once, reused."""
    B, C, H, W = image.shape
    HW = H * W
    K_enc = prep["enc_w"].shape[0]          # C*HW (pool folded)
    F_pad = prep["enc_w"].shape[1]
    S_pad = prep["sp_w1"].shape[0]
    P = prep["ip_w1"].shape[1]              # projection_dim
    S = reduced_expression.shape[1]
    assert K_enc == C * HW, "prepared weights do not match image shape"
    assert P % 128 == 0, "projection_dim must be a multiple of 128 (else LayerNorm/softmax need lane masking)"

    # Batch tile: multiple of 16 sublanes (bf16) and divides B; else full batch.
    # Guidance: tile_b=128 on v5e (128x128 MXU), 256 on v6e/v7x (256x256 MXU).
    tile_b = min(tile_b, B)
    if not (tile_b % 16 == 0 and B % tile_b == 0):
        tile_b = B

    # ---- inputs: flatten image, zero-pad spot features, cast to bf16 -------- #
    img_flat = image.reshape(B, C * HW).astype(jnp.bfloat16)
    spot = jnp.pad(reduced_expression.astype(jnp.float32),
                   ((0, 0), (0, S_pad - S))).astype(jnp.bfloat16)

    grid = (B // tile_b,)

    # Constant weights: fetched once (constant index_map) and single-buffered.
    const = lambda shape: pl.BlockSpec(shape, lambda i: (0, 0),
                                       pipeline_mode=pl.Buffered(1))

    kernel = functools.partial(fused_densenet_kernel,
                               temperature=float(temperature), batch=B, tile_b=tile_b)

    flops = (2 * B * K_enc * F_pad                       # encoder matmul
             + 2 * B * (F_pad + P) * P                   # image projection head
             + 2 * B * (S_pad + P) * P                   # spot projection head
             + 3 * 2 * B * B * P)                        # logits + 2 similarity matmuls
    transcendentals = 2 * B * P + 4 * B * B              # GELU + softmax/log-softmax exps
    bytes_accessed = (img_flat.size * 2 + spot.size * 2
                      + prep["enc_w"].size * 2 + prep["enc_b"].size * 4
                      + (prep["ip_w1"].size + prep["ip_w2"].size
                         + prep["sp_w1"].size + prep["sp_w2"].size) * 2
                      + (prep["ip_vec"].size + prep["sp_vec"].size) * 4
                      + 4)

    loss = pl.pallas_call(
        kernel,
        out_shape=jax.ShapeDtypeStruct((1, 1), jnp.float32),
        grid_spec=pltpu.PrefetchScalarGridSpec(
            num_scalar_prefetch=0,
            grid=grid,
            in_specs=[
                pl.BlockSpec((tile_b, K_enc), lambda i: (i, 0)),   # image tile (pipelined)
                pl.BlockSpec((tile_b, S_pad), lambda i: (i, 0)),   # spot tile (pipelined)
                const((K_enc, F_pad)),                             # enc_w (pool folded)
                const((1, F_pad)),                                 # enc_b
                const((F_pad, P)), const((P, P)), const((4, P)),   # image proj head
                const((S_pad, P)), const((P, P)), const((4, P)),   # spot proj head
            ],
            out_specs=pl.BlockSpec((1, 1), lambda i: (0, 0)),
            scratch_shapes=[
                pltpu.VMEM((B, P), jnp.float32),   # image embeddings (resident)
                pltpu.VMEM((B, P), jnp.float32),   # spot embeddings (resident)
            ],
        ),
        compiler_params=pltpu.CompilerParams(
            # "arbitrary": the loss on the last step needs the scratch filled by
            # all previous steps, so the batch axis cannot be core-sharded.
            dimension_semantics=("arbitrary",),
            vmem_limit_bytes=48 * 1024 * 1024,     # within v7x's 64 MiB ceiling
        ),
        cost_estimate=pl.CostEstimate(flops=flops,
                                      transcendentals=transcendentals,
                                      bytes_accessed=bytes_accessed),
    )(img_flat, spot, prep["enc_w"], prep["enc_b"],
      prep["ip_w1"], prep["ip_w2"], prep["ip_vec"],
      prep["sp_w1"], prep["sp_w2"], prep["sp_vec"])

    return loss[0, 0]


if __name__ == "__main__":
    # Small shapes consistent with the module's forward.
    B, C, H, W = 16, 4, 16, 16
    IMAGE_EMBEDDING = 64       # DenseEncoder output width (default in module: 1000)
    SPOT_EMBEDDING = 32        # CFG.spot_embedding
    PROJECTION_DIM = 128       # CFG.projection_dim
    TEMPERATURE = 1.0          # CFG.temperature

    key = jax.random.PRNGKey(0)
    k_img, k_spot, k_params = jax.random.split(key, 3)

    image = jax.random.normal(k_img, (B, C, H, W), jnp.float32)
    reduced_expression = jax.random.normal(k_spot, (B, SPOT_EMBEDDING), jnp.float32)

    params = init_params(k_params, C, IMAGE_EMBEDDING, SPOT_EMBEDDING, PROJECTION_DIM)

    # One-time prep (hoisted out of the per-step forward path).
    prep = prepare_weights(params, C, H, W)

    loss = densenet_forward(image, reduced_expression, prep, TEMPERATURE, tile_b=256)
    jax.block_until_ready(loss)
    print("KERNEL_OK")
</pallas_src>

<mosaic_0001>
module attributes {stable_mosaic.version = 11 : i64} {
  func.func @fused_densenet_kernel(%arg0: i32, %arg1: memref<16x1024xbf16, #tpu.memory_space<vmem>>, %arg2: memref<16x128xbf16, #tpu.memory_space<vmem>>, %arg3: memref<1024x128xbf16, #tpu.memory_space<vmem>>, %arg4: memref<1x128xf32, #tpu.memory_space<vmem>>, %arg5: memref<128x128xbf16, #tpu.memory_space<vmem>>, %arg6: memref<128x128xbf16, #tpu.memory_space<vmem>>, %arg7: memref<4x128xf32, #tpu.memory_space<vmem>>, %arg8: memref<128x128xbf16, #tpu.memory_space<vmem>>, %arg9: memref<128x128xbf16, #tpu.memory_space<vmem>>, %arg10: memref<4x128xf32, #tpu.memory_space<vmem>>, %arg11: memref<1x1xf32, #tpu.memory_space<vmem>>, %arg12: memref<16x128xf32, #tpu.memory_space<vmem>>, %arg13: memref<16x128xf32, #tpu.memory_space<vmem>>) attributes {dimension_semantics = [#tpu.dimension_semantics<arbitrary>], iteration_bounds = array<i64: 1>, scalar_prefetch = 0 : i64, scratch_operands = 2 : i64, tpu.core_type = #tpu.core_type<tc>, window_params = [{transform_indices = @transform_0, window_bounds = array<i64: 16, 1024>}, {transform_indices = @transform_1, window_bounds = array<i64: 16, 128>}, {pipeline_mode = #tpu.pipeline_mode<synchronous>, transform_indices = @transform_2, window_bounds = array<i64: 1024, 128>}, {pipeline_mode = #tpu.pipeline_mode<synchronous>, transform_indices = @transform_3, window_bounds = array<i64: 1, 128>}, {pipeline_mode = #tpu.pipeline_mode<synchronous>, transform_indices = @transform_4, window_bounds = array<i64: 128, 128>}, {pipeline_mode = #tpu.pipeline_mode<synchronous>, transform_indices = @transform_5, window_bounds = array<i64: 128, 128>}, {pipeline_mode = #tpu.pipeline_mode<synchronous>, transform_indices = @transform_6, window_bounds = array<i64: 4, 128>}, {pipeline_mode = #tpu.pipeline_mode<synchronous>, transform_indices = @transform_7, window_bounds = array<i64: 128, 128>}, {pipeline_mode = #tpu.pipeline_mode<synchronous>, transform_indices = @transform_8, window_bounds = array<i64: 128, 128>}, {pipeline_mode = #tpu.pipeline_mode<synchronous>, transform_indices = @transform_9, window_bounds = array<i64: 4, 128>}, {pipeline_mode = #tpu.pipeline_mode<synchronous>, transform_indices = @transform_10, window_bounds = array<i64: 1, 1>}]} {
    %c0 = arith.constant 0 : index
    %c0_0 = arith.constant 0 : index
    %0 = vector.load %arg1[%c0, %c0_0] : memref<16x1024xbf16, #tpu.memory_space<vmem>>, vector<16x1024xbf16>
    %c0_1 = arith.constant 0 : index
    %c0_2 = arith.constant 0 : index
    %1 = vector.load %arg3[%c0_1, %c0_2] : memref<1024x128xbf16, #tpu.memory_space<vmem>>, vector<1024x128xbf16>
    %cst = arith.constant dense<0.000000e+00> : vector<16x128xf32>
    %2 = tpu.matmul %0, %1, %cst {dimension_numbers = #tpu.dot_dimension_numbers<[1], [0], [0], [1], [0, 0, 1, 1], [], []>} : vector<16x1024xbf16>, vector<1024x128xbf16>, vector<16x128xf32> -> vector<16x128xf32>
    %c0_3 = arith.constant 0 : index
    %c0_4 = arith.constant 0 : index
    %3 = vector.load %arg4[%c0_3, %c0_4] : memref<1x128xf32, #tpu.memory_space<vmem>>, vector<1x128xf32>
    %4 = vector.broadcast %3 : vector<1x128xf32> to vector<16x128xf32>
    %5 = arith.addf %2, %4 : vector<16x128xf32>
    %c16_i32 = arith.constant 16 : i32
    %6 = arith.muli %arg0, %c16_i32 : i32
    %7 = tpu.assume_multiple %6, 16 : i32
    %c0_5 = arith.constant 0 : index
    %c0_6 = arith.constant 0 : index
    %8 = vector.load %arg7[%c0_5, %c0_6] : memref<4x128xf32, #tpu.memory_space<vmem>>, vector<1x128xf32>
    %c1 = arith.constant 1 : index
    %c0_7 = arith.constant 0 : index
    %9 = vector.load %arg7[%c1, %c0_7] : memref<4x128xf32, #tpu.memory_space<vmem>>, vector<1x128xf32>
    %c2 = arith.constant 2 : index
    %c0_8 = arith.constant 0 : index
    %10 = vector.load %arg7[%c2, %c0_8] : memref<4x128xf32, #tpu.memory_space<vmem>>, vector<1x128xf32>
    %c3 = arith.constant 3 : index
    %c0_9 = arith.constant 0 : index
    %11 = vector.load %arg7[%c3, %c0_9] : memref<4x128xf32, #tpu.memory_space<vmem>>, vector<1x128xf32>
    %12 = arith.truncf %5 : vector<16x128xf32> to vector<16x128xbf16>
    %c0_10 = arith.constant 0 : index
    %c0_11 = arith.constant 0 : index
    %13 = vector.load %arg5[%c0_10, %c0_11] : memref<128x128xbf16, #tpu.memory_space<vmem>>, vector<128x128xbf16>
    %cst_12 = arith.constant dense<0.000000e+00> : vector<16x128xf32>
    %14 = tpu.matmul %12, %13, %cst_12 {dimension_numbers = #tpu.dot_dimension_numbers<[1], [0], [0], [1], [0, 0, 1, 1], [], []>} : vector<16x128xbf16>, vector<128x128xbf16>, vector<16x128xf32> -> vector<16x128xf32>
    %15 = vector.broadcast %8 : vector<1x128xf32> to vector<16x128xf32>
    %16 = arith.addf %14, %15 : vector<16x128xf32>
    %cst_13 = arith.constant 5.000000e-01 : f32
    %17 = vector.broadcast %cst_13 : f32 to vector<16x128xf32>
    %18 = arith.mulf %17, %16 : vector<16x128xf32>
    %cst_14 = arith.constant 0.707106769 : f32
    %19 = vector.broadcast %cst_14 : f32 to vector<16x128xf32>
    %20 = arith.mulf %16, %19 : vector<16x128xf32>
    %21 = math.erf %20 : vector<16x128xf32>
    %cst_15 = arith.constant 1.000000e+00 : f32
    %22 = vector.broadcast %cst_15 : f32 to vector<16x128xf32>
    %23 = arith.addf %22, %21 : vector<16x128xf32>
    %24 = arith.mulf %18, %23 : vector<16x128xf32>
    %25 = arith.truncf %24 : vector<16x128xf32> to vector<16x128xbf16>
    %c0_16 = arith.constant 0 : index
    %c0_17 = arith.constant 0 : index
    %26 = vector.load %arg6[%c0_16, %c0_17] : memref<128x128xbf16, #tpu.memory_space<vmem>>, vector<128x128xbf16>
    %cst_18 = arith.constant dense<0.000000e+00> : vector<16x128xf32>
    %27 = tpu.matmul %25, %26, %cst_18 {dimension_numbers = #tpu.dot_dimension_numbers<[1], [0], [0], [1], [0, 0, 1, 1], [], []>} : vector<16x128xbf16>, vector<128x128xbf16>, vector<16x128xf32> -> vector<16x128xf32>
    %28 = vector.broadcast %9 : vector<1x128xf32> to vector<16x128xf32>
    %29 = arith.addf %27, %28 : vector<16x128xf32>
    %30 = arith.addf %29, %16 : vector<16x128xf32>
    %cst_19 = arith.constant dense<0.000000e+00> : vector<16xf32>
    %31 = vector.multi_reduction <add>, %30, %cst_19 [1] : vector<16x128xf32> to vector<16xf32>
    %32 = vector.shape_cast %31 : vector<16xf32> to vector<16x1xf32>
    %cst_20 = arith.constant 1.280000e+02 : f32
    %33 = vector.broadcast %cst_20 : f32 to vector<16x1xf32>
    %34 = arith.divf %32, %33 : vector<16x1xf32>
    %35 = vector.broadcast %34 : vector<16x1xf32> to vector<16x128xf32>
    %36 = arith.subf %30, %35 : vector<16x128xf32>
    %37 = arith.mulf %36, %36 : vector<16x128xf32>
    %cst_21 = arith.constant dense<0.000000e+00> : vector<16xf32>
    %38 = vector.multi_reduction <add>, %37, %cst_21 [1] : vector<16x128xf32> to vector<16xf32>
    %39 = vector.shape_cast %38 : vector<16xf32> to vector<16x1xf32>
    %cst_22 = arith.constant 1.280000e+02 : f32
    %40 = vector.broadcast %cst_22 : f32 to vector<16x1xf32>
    %41 = arith.divf %39, %40 : vector<16x1xf32>
    %42 = vector.broadcast %34 : vector<16x1xf32> to vector<16x128xf32>
    %43 = arith.subf %30, %42 : vector<16x128xf32>
    %cst_23 = arith.constant 9.99999974E-6 : f32
    %44 = vector.broadcast %cst_23 : f32 to vector<16x1xf32>
    %45 = arith.addf %41, %44 : vector<16x1xf32>
    %46 = math.rsqrt %45 : vector<16x1xf32>
    %47 = vector.broadcast %46 : vector<16x1xf32> to vector<16x128xf32>
    %48 = arith.mulf %43, %47 : vector<16x128xf32>
    %49 = vector.broadcast %10 : vector<1x128xf32> to vector<16x128xf32>
    %50 = arith.mulf %48, %49 : vector<16x128xf32>
    %51 = vector.broadcast %11 : vector<1x128xf32> to vector<16x128xf32>
    %52 = arith.addf %50, %51 : vector<16x128xf32>
    %53 = arith.index_cast %7 : i32 to index
    %c0_24 = arith.constant 0 : index
    %54 = vector.load %arg12[%53, %c0_24] : memref<16x128xf32, #tpu.memory_space<vmem>>, vector<16x128xf32>
    tpu.vector_store %arg12[%53, %c0_24], %52 {strides = array<i32>} : memref<16x128xf32, #tpu.memory_space<vmem>>, vector<16x128xf32>,
    %c0_25 = arith.constant 0 : index
    %c0_26 = arith.constant 0 : index
    %55 = vector.load %arg2[%c0_25, %c0_26] : memref<16x128xbf16, #tpu.memory_space<vmem>>, vector<16x128xbf16>
    %c0_27 = arith.constant 0 : index
    %c0_28 = arith.constant 0 : index
    %56 = vector.load %arg10[%c0_27, %c0_28] : memref<4x128xf32, #tpu.memory_space<vmem>>, vector<1x128xf32>
    %c1_29 = arith.constant 1 : index
    %c0_30 = arith.constant 0 : index
    %57 = vector.load %arg10[%c1_29, %c0_30] : memref<4x128xf32, #tpu.memory_space<vmem>>, vector<1x128xf32>
    %c2_31 = arith.constant 2 : index
    %c0_32 = arith.constant 0 : index
    %58 = vector.load %arg10[%c2_31, %c0_32] : memref<4x128xf32, #tpu.memory_space<vmem>>, vector<1x128xf32>
    %c3_33 = arith.constant 3 : index
    %c0_34 = arith.constant 0 : index
    %59 = vector.load %arg10[%c3_33, %c0_34] : memref<4x128xf32, #tpu.memory_space<vmem>>, vector<1x128xf32>
    %c0_35 = arith.constant 0 : index
    %c0_36 = arith.constant 0 : index
    %60 = vector.load %arg8[%c0_35, %c0_36] : memref<128x128xbf16, #tpu.memory_space<vmem>>, vector<128x128xbf16>
    %cst_37 = arith.constant dense<0.000000e+00> : vector<16x128xf32>
    %61 = tpu.matmul %55, %60, %cst_37 {dimension_numbers = #tpu.dot_dimension_numbers<[1], [0], [0], [1], [0, 0, 1, 1], [], []>} : vector<16x128xbf16>, vector<128x128xbf16>, vector<16x128xf32> -> vector<16x128xf32>
    %62 = vector.broadcast %56 : vector<1x128xf32> to vector<16x128xf32>
    %63 = arith.addf %61, %62 : vector<16x128xf32>
    %cst_38 = arith.constant 5.000000e-01 : f32
    %64 = vector.broadcast %cst_38 : f32 to vector<16x128xf32>
    %65 = arith.mulf %64, %63 : vector<16x128xf32>
    %cst_39 = arith.constant 0.707106769 : f32
    %66 = vector.broadcast %cst_39 : f32 to vector<16x128xf32>
    %67 = arith.mulf %63, %66 : vector<16x128xf32>
    %68 = math.erf %67 : vector<16x128xf32>
    %cst_40 = arith.constant 1.000000e+00 : f32
    %69 = vector.broadcast %cst_40 : f32 to vector<16x128xf32>
    %70 = arith.addf %69, %68 : vector<16x128xf32>
    %71 = arith.mulf %65, %70 : vector<16x128xf32>
    %72 = arith.truncf %71 : vector<16x128xf32> to vector<16x128xbf16>
    %c0_41 = arith.constant 0 : index
    %c0_42 = arith.constant 0 : index
    %73 = vector.load %arg9[%c0_41, %c0_42] : memref<128x128xbf16, #tpu.memory_space<vmem>>, vector<128x128xbf16>
    %cst_43 = arith.constant dense<0.000000e+00> : vector<16x128xf32>
    %74 = tpu.matmul %72, %73, %cst_43 {dimension_numbers = #tpu.dot_dimension_numbers<[1], [0], [0], [1], [0, 0, 1, 1], [], []>} : vector<16x128xbf16>, vector<128x128xbf16>, vector<16x128xf32> -> vector<16x128xf32>
    %75 = vector.broadcast %57 : vector<1x128xf32> to vector<16x128xf32>
    %76 = arith.addf %74, %75 : vector<16x128xf32>
    %77 = arith.addf %76, %63 : vector<16x128xf32>
    %cst_44 = arith.constant dense<0.000000e+00> : vector<16xf32>
    %78 = vector.multi_reduction <add>, %77, %cst_44 [1] : vector<16x128xf32> to vector<16xf32>
    %79 = vector.shape_cast %78 : vector<16xf32> to vector<16x1xf32>
    %cst_45 = arith.constant 1.280000e+02 : f32
    %80 = vector.broadcast %cst_45 : f32 to vector<16x1xf32>
    %81 = arith.divf %79, %80 : vector<16x1xf32>
    %82 = vector.broadcast %81 : vector<16x1xf32> to vector<16x128xf32>
    %83 = arith.subf %77, %82 : vector<16x128xf32>
    %84 = arith.mulf %83, %83 : vector<16x128xf32>
    %cst_46 = arith.constant dense<0.000000e+00> : vector<16xf32>
    %85 = vector.multi_reduction <add>, %84, %cst_46 [1] : vector<16x128xf32> to vector<16xf32>
    %86 = vector.shape_cast %85 : vector<16xf32> to vector<16x1xf32>
    %cst_47 = arith.constant 1.280000e+02 : f32
    %87 = vector.broadcast %cst_47 : f32 to vector<16x1xf32>
    %88 = arith.divf %86, %87 : vector<16x1xf32>
    %89 = vector.broadcast %81 : vector<16x1xf32> to vector<16x128xf32>
    %90 = arith.subf %77, %89 : vector<16x128xf32>
    %cst_48 = arith.constant 9.99999974E-6 : f32
    %91 = vector.broadcast %cst_48 : f32 to vector<16x1xf32>
    %92 = arith.addf %88, %91 : vector<16x1xf32>
    %93 = math.rsqrt %92 : vector<16x1xf32>
    %94 = vector.broadcast %93 : vector<16x1xf32> to vector<16x128xf32>
    %95 = arith.mulf %90, %94 : vector<16x128xf32>
    %96 = vector.broadcast %58 : vector<1x128xf32> to vector<16x128xf32>
    %97 = arith.mulf %95, %96 : vector<16x128xf32>
    %98 = vector.broadcast %59 : vector<1x128xf32> to vector<16x128xf32>
    %99 = arith.addf %97, %98 : vector<16x128xf32>
    %100 = arith.index_cast %7 : i32 to index
    %c0_49 = arith.constant 0 : index
    %101 = vector.load %arg13[%100, %c0_49] : memref<16x128xf32, #tpu.memory_space<vmem>>, vector<16x128xf32>
    tpu.vector_store %arg13[%100, %c0_49], %99 {strides = array<i32>} : memref<16x128xf32, #tpu.memory_space<vmem>>, vector<16x128xf32>,
    %c0_i32 = arith.constant 0 : i32
    %102 = arith.cmpi eq, %arg0, %c0_i32 : i32
    %103 = arith.extui %102 : i1 to i32
    %c0_i32_50 = arith.constant 0 : i32
    %104 = arith.cmpi ne, %103, %c0_i32_50 : i32
    scf.if %104 {
      %c0_51 = arith.constant 0 : index
      %c0_52 = arith.constant 0 : index
      %105 = vector.load %arg12[%c0_51, %c0_52] : memref<16x128xf32, #tpu.memory_space<vmem>>, vector<16x128xf32>
      %c0_53 = arith.constant 0 : index
      %c0_54 = arith.constant 0 : index
      %106 = vector.load %arg13[%c0_53, %c0_54] : memref<16x128xf32, #tpu.memory_space<vmem>>, vector<16x128xf32>
      %cst_55 = arith.constant dense<0.000000e+00> : vector<16x16xf32>
      %107 = tpu.matmul %106, %105, %cst_55 {dimension_numbers = #tpu.dot_dimension_numbers<[1], [1], [0], [0], [0, 0, 1, 0], [], []>} : vector<16x128xf32>, vector<16x128xf32>, vector<16x16xf32> -> vector<16x16xf32>
      %cst_56 = arith.constant 1.000000e+00 : f32
      %108 = vector.broadcast %cst_56 : f32 to vector<16x16xf32>
      %109 = arith.divf %107, %108 : vector<16x16xf32>
      %cst_57 = arith.constant dense<0.000000e+00> : vector<16x16xf32>
      %110 = tpu.matmul %105, %105, %cst_57 {dimension_numbers = #tpu.dot_dimension_numbers<[1], [1], [0], [0], [0, 0, 1, 0], [], []>} : vector<16x128xf32>, vector<16x128xf32>, vector<16x16xf32> -> vector<16x16xf32>
      %cst_58 = arith.constant dense<0.000000e+00> : vector<16x16xf32>
      %111 = tpu.matmul %106, %106, %cst_58 {dimension_numbers = #tpu.dot_dimension_numbers<[1], [1], [0], [0], [0, 0, 1, 0], [], []>} : vector<16x128xf32>, vector<16x128xf32>, vector<16x16xf32> -> vector<16x16xf32>
      %112 = arith.addf %110, %111 : vector<16x16xf32>
      %cst_59 = arith.constant 5.000000e-01 : f32
      %113 = vector.broadcast %cst_59 : f32 to vector<16x16xf32>
      %114 = arith.mulf %112, %113 : vector<16x16xf32>
      %cst_60 = arith.constant dense<0xFF800000> : vector<16xf32>
      %115 = vector.multi_reduction <maximumf>, %114, %cst_60 [1] : vector<16x16xf32> to vector<16xf32>
      %116 = vector.shape_cast %115 : vector<16xf32> to vector<16x1xf32>
      %117 = vector.broadcast %116 : vector<16x1xf32> to vector<16x16xf32>
      %118 = arith.subf %114, %117 : vector<16x16xf32>
      %119 = math.exp %118 : vector<16x16xf32>
      %cst_61 = arith.constant dense<0.000000e+00> : vector<16xf32>
      %120 = vector.multi_reduction <add>, %119, %cst_61 [1] : vector<16x16xf32> to vector<16xf32>
      %121 = vector.shape_cast %120 : vector<16xf32> to vector<16x1xf32>
      %122 = vector.broadcast %121 : vector<16x1xf32> to vector<16x16xf32>
      %123 = arith.divf %119, %122 : vector<16x16xf32>
      %cst_62 = arith.constant 0.000000e+00 : f32
      %124 = vector.broadcast %cst_62 : f32 to vector<16x16xf32>
      %125 = arith.subf %124, %123 : vector<16x16xf32>
      %cst_63 = arith.constant dense<0xFF800000> : vector<16xf32>
      %126 = vector.multi_reduction <maximumf>, %109, %cst_63 [1] : vector<16x16xf32> to vector<16xf32>
      %127 = vector.shape_cast %126 : vector<16xf32> to vector<16x1xf32>
      %128 = vector.broadcast %127 : vector<16x1xf32> to vector<16x16xf32>
      %129 = arith.subf %109, %128 : vector<16x16xf32>
      %130 = math.exp %129 : vector<16x16xf32>
      %cst_64 = arith.constant dense<0.000000e+00> : vector<16xf32>
      %131 = vector.multi_reduction <add>, %130, %cst_64 [1] : vector<16x16xf32> to vector<16xf32>
      %132 = vector.shape_cast %131 : vector<16xf32> to vector<16x1xf32>
      %133 = math.log %132 : vector<16x1xf32>
      %134 = vector.broadcast %133 : vector<16x1xf32> to vector<16x16xf32>
      %135 = arith.subf %129, %134 : vector<16x16xf32>
      %cst_65 = arith.constant dense<0xFF800000> : vector<16xf32>
      %136 = vector.multi_reduction <maximumf>, %109, %cst_65 [0] : vector<16x16xf32> to vector<16xf32>
      %137 = vector.shape_cast %136 : vector<16xf32> to vector<1x16xf32>
      %138 = vector.broadcast %137 : vector<1x16xf32> to vector<16x16xf32>
      %139 = arith.subf %109, %138 : vector<16x16xf32>
      %140 = math.exp %139 : vector<16x16xf32>
      %cst_66 = arith.constant dense<0.000000e+00> : vector<16xf32>
      %141 = vector.multi_reduction <add>, %140, %cst_66 [0] : vector<16x16xf32> to vector<16xf32>
      %142 = vector.shape_cast %141 : vector<16xf32> to vector<1x16xf32>
      %143 = math.log %142 : vector<1x16xf32>
      %144 = vector.broadcast %143 : vector<1x16xf32> to vector<16x16xf32>
      %145 = arith.subf %139, %144 : vector<16x16xf32>
      %146 = arith.addf %135, %145 : vector<16x16xf32>
      %147 = arith.mulf %125, %146 : vector<16x16xf32>
      %148 = vector.shape_cast %147 : vector<16x16xf32> to vector<1x16x16xf32>
      %cst_67 = arith.constant dense<0.000000e+00> : vector<1xf32>
      %149 = vector.multi_reduction <add>, %148, %cst_67 [1, 2] : vector<1x16x16xf32> to vector<1xf32>
      %150 = vector.shape_cast %149 : vector<1xf32> to vector<1x1x1xf32>
      %151 = vector.extract %150[0, 0, 0] : f32 from vector<1x1x1xf32>
      %152 = vector.broadcast %151 : f32 to vector<1x1xf32>
      %cst_68 = arith.constant 3.125000e-02 : f32
      %153 = vector.broadcast %cst_68 : f32 to vector<1x1xf32>
      %154 = arith.mulf %152, %153 : vector<1x1xf32>
      %c0_69 = arith.constant 0 : index
      %c0_70 = arith.constant 0 : index
      %155 = vector.load %arg11[%c0_69, %c0_70] : memref<1x1xf32, #tpu.memory_space<vmem>>, vector<1x1xf32>
      tpu.vector_store %arg11[%c0_69, %c0_70], %154 {strides = array<i32>} : memref<1x1xf32, #tpu.memory_space<vmem>>, vector<1x1xf32>,
    } else {
    }
    return
  }
  func.func @transform_0(%arg0: i32) -> (i32, i32) {
    %c0_i32 = arith.constant 0 : i32
    %c0_i32_0 = arith.constant 0 : i32
    return %arg0, %c0_i32 : i32, i32
  }
  func.func @transform_1(%arg0: i32) -> (i32, i32) {
    %c0_i32 = arith.constant 0 : i32
    %c0_i32_0 = arith.constant 0 : i32
    return %arg0, %c0_i32 : i32, i32
  }
  func.func @transform_2(%arg0: i32) -> (i32, i32) {
    %c0_i32 = arith.constant 0 : i32
    %c0_i32_0 = arith.constant 0 : i32
    %c0_i32_1 = arith.constant 0 : i32
    return %c0_i32, %c0_i32_0 : i32, i32
  }
  func.func @transform_3(%arg0: i32) -> (i32, i32) {
    %c0_i32 = arith.constant 0 : i32
    %c0_i32_0 = arith.constant 0 : i32
    %c0_i32_1 = arith.constant 0 : i32
    return %c0_i32, %c0_i32_0 : i32, i32
  }
  func.func @transform_4(%arg0: i32) -> (i32, i32) {
    %c0_i32 = arith.constant 0 : i32
    %c0_i32_0 = arith.constant 0 : i32
    %c0_i32_1 = arith.constant 0 : i32
    return %c0_i32, %c0_i32_0 : i32, i32
  }
  func.func @transform_5(%arg0: i32) -> (i32, i32) {
    %c0_i32 = arith.constant 0 : i32
    %c0_i32_0 = arith.constant 0 : i32
    %c0_i32_1 = arith.constant 0 : i32
    return %c0_i32, %c0_i32_0 : i32, i32
  }
  func.func @transform_6(%arg0: i32) -> (i32, i32) {
    %c0_i32 = arith.constant 0 : i32
    %c0_i32_0 = arith.constant 0 : i32
    %c0_i32_1 = arith.constant 0 : i32
    return %c0_i32, %c0_i32_0 : i32, i32
  }
  func.func @transform_7(%arg0: i32) -> (i32, i32) {
    %c0_i32 = arith.constant 0 : i32
    %c0_i32_0 = arith.constant 0 : i32
    %c0_i32_1 = arith.constant 0 : i32
    return %c0_i32, %c0_i32_0 : i32, i32
  }
  func.func @transform_8(%arg0: i32) -> (i32, i32) {
    %c0_i32 = arith.constant 0 : i32
    %c0_i32_0 = arith.constant 0 : i32
    %c0_i32_1 = arith.constant 0 : i32
    return %c0_i32, %c0_i32_0 : i32, i32
  }
  func.func @transform_9(%arg0: i32) -> (i32, i32) {
    %c0_i32 = arith.constant 0 : i32
    %c0_i32_0 = arith.constant 0 : i32
    %c0_i32_1 = arith.constant 0 : i32
    return %c0_i32, %c0_i32_0 : i32, i32
  }
  func.func @transform_10(%arg0: i32) -> (i32, i32) {
    %c0_i32 = arith.constant 0 : i32
    %c0_i32_0 = arith.constant 0 : i32
    %c0_i32_1 = arith.constant 0 : i32
    return %c0_i32, %c0_i32_0 : i32, i32
  }
}

</mosaic_0001>

<llo_original>
// kernel: tpu_custom_call.1
$region0: #{tpu_custom_call.1}
  #allocation0 [shape = 'u32[]', space=smem, size = 0x4, offset = 0x4, fixed_abs, tag = 'smem constant byte address 0x4 - core index']
  #allocation1 [shape = 'u32[144,128]{1,0:T(1,128)}', space=vmem, size = 0x12000, scoped, tag = 'internal scratch']
  #allocation2 [shape = 'f32[16,128]{1,0:T(8,128)}', space=vmem, size = 0x2000, scoped, tag = 'scratch operand']
  #allocation3 [shape = 'f32[16,128]{1,0:T(8,128)}', space=vmem, size = 0x2000, scoped, tag = 'scratch operand']
  %s0 = inlined_call_operand.hbm [shape: bf16[16,1024], index: 0, kind: input, shape index: {}]
  %s1 = inlined_call_operand.hbm [shape: bf16[16,128], index: 1, kind: input, shape index: {}]
  %s2 = inlined_call_operand.hbm [shape: bf16[1024,128], index: 2, kind: input, shape index: {}]
  %s3 = inlined_call_operand.vmem [shape: f32[1,128], index: 3, kind: input, shape index: {}]
  %s4 = inlined_call_operand.hbm [shape: bf16[128,128], index: 4, kind: input, shape index: {}]
  %s5 = inlined_call_operand.hbm [shape: bf16[128,128], index: 5, kind: input, shape index: {}]
  %s6 = inlined_call_operand.vmem [shape: f32[4,128], index: 6, kind: input, shape index: {}]
  %s7 = inlined_call_operand.hbm [shape: bf16[128,128], index: 7, kind: input, shape index: {}]
  %s8 = inlined_call_operand.hbm [shape: bf16[128,128], index: 8, kind: input, shape index: {}]
  %s9 = inlined_call_operand.vmem [shape: f32[4,128], index: 9, kind: input, shape index: {}]
  %s10 = inlined_call_operand.hbm [shape: f32[1,1], index: 10, kind: output, shape index: {}]
  %s11 = sld [smem:[#allocation0]]
  $region82: #{tpu_custom_call.1} parent=0
    _
  %s13 = ssub.s32 1, %s11
  %s14 = scalar_select 0, %s13, %s11
  $region1: #{tpu_custom_call.1} parent=0
    #allocation4 [shape = 'u8[32768]{0}', space=vmem, size = 0x8000, scoped, tag = 'input window, operand 0, single buffered']
    #allocation5 [shape = 's32[1]{0}', space=sflag, size = 0x4, scoped, tag = 'scoped memory for tpu_custom_call.1']
    #allocation6 [shape = 's32[1]{0}', space=sflag, size = 0x4, scoped, tag = 'scoped memory for tpu_custom_call.1']
    #allocation7 [shape = 'u8[4096]{0}', space=vmem, size = 0x1000, scoped, tag = 'input window, operand 1, single buffered']
    #allocation8 [shape = 's32[1]{0}', space=sflag, size = 0x4, scoped, tag = 'scoped memory for tpu_custom_call.1']
    #allocation9 [shape = 'u8[262144]{0}', space=vmem, size = 0x40000, scoped, tag = 'input window, operand 2, single buffered']
    #allocation10 [shape = 'u8[32768]{0}', space=vmem, size = 0x8000, scoped, tag = 'input window, operand 4, single buffered']
    #allocation11 [shape = 's32[1]{0}', space=sflag, size = 0x4, scoped, tag = 'scoped memory for tpu_custom_call.1']
    #allocation12 [shape = 'u8[32768]{0}', space=vmem, size = 0x8000, scoped, tag = 'input window, operand 5, single buffered']
    #allocation13 [shape = 'u8[32768]{0}', space=vmem, size = 0x8000, scoped, tag = 'input window, operand 7, single buffered']
    #allocation14 [shape = 's32[1]{0}', space=sflag, size = 0x4, scoped, tag = 'scoped memory for tpu_custom_call.1']
    #allocation15 [shape = 'u8[32768]{0}', space=vmem, size = 0x8000, scoped, tag = 'input window, operand 8, single buffered']
    #allocation16 [shape = 'u8[512]{0}', space=vmem, size = 0x400, scoped, tag = 'output window, operand 0, single buffered']
    %15 = vsyncpa [#allocation5], 0
    %16 = vsyncpa [#allocation8], 0
    %17 = vsyncpa [#allocation11], 0
    %18 = vsyncpa [#allocation14], 0
    %19 = vsyncpa [#allocation6], 0
    // Predicated region
    $region2: #{tpu_custom_call.1} parent=1 // pred_check
      _
    $region3: #{tpu_custom_call.1} parent=1 // pred_check_branch
      %21 = sbr.rel (0) target = $region5
    $region4: #{tpu_custom_call.1} parent=1 // pred_region
      %s23 = ssub.s32 1024, 1024
      %24 = vsyncadd [#allocation5], %s23
      %s25 = sshll.u32 [#allocation4], 4
      %s26 = int_to_ptr.vmem [resolvable:$true] %s25
      %31 = dma.hbm_to_vmem [thread:$0]  %s0, 1024, %s26, [#allocation5], 512, 512, 32
    $region5: #{tpu_custom_call.1} parent=1 // pred_fallthru
      _
    // Predicated region
    $region6: #{tpu_custom_call.1} parent=1 // pred_check
      _
    $region7: #{tpu_custom_call.1} parent=1 // pred_check_branch
      %33 = sbr.rel (0) target = $region9
    $region8: #{tpu_custom_call.1} parent=1 // pred_region
      %s35 = ssub.s32 128, 128
      %36 = vsyncadd [#allocation8], %s35
      %s37 = sshll.u32 [#allocation7], 4
      %s38 = int_to_ptr.vmem [resolvable:$true] %s37
      %43 = dma.hbm_to_vmem [thread:$0]  %s1, 128, %s38, [#allocation8], 64, 64, 4
    $region9: #{tpu_custom_call.1} parent=1 // pred_fallthru
      _
    // Predicated region
    $region10: #{tpu_custom_call.1} parent=1 // pred_check
      _
    $region11: #{tpu_custom_call.1} parent=1 // pred_check_branch
      %45 = sbr.rel (0) target = $region13
    $region12: #{tpu_custom_call.1} parent=1 // pred_region
      %s47 = ssub.s32 8192, 8192
      %48 = vsyncadd [#allocation8], %s47
      %s49 = sshll.u32 [#allocation9], 4
      %s50 = int_to_ptr.vmem [resolvable:$true] %s49
      %55 = dma.hbm_to_vmem [thread:$0]  %s2, 8192, %s50, [#allocation8], 64, 64, 4
    $region13: #{tpu_custom_call.1} parent=1 // pred_fallthru
      _
    // Predicated region
    $region14: #{tpu_custom_call.1} parent=1 // pred_check
      _
    $region15: #{tpu_custom_call.1} parent=1 // pred_check_branch
      %57 = sbr.rel (0) target = $region17
    $region16: #{tpu_custom_call.1} parent=1 // pred_region
      _
    $region17: #{tpu_custom_call.1} parent=1 // pred_fallthru
      _
    // Predicated region
    $region18: #{tpu_custom_call.1} parent=1 // pred_check
      _
    $region19: #{tpu_custom_call.1} parent=1 // pred_check_branch
      %59 = sbr.rel (0) target = $region21
    $region20: #{tpu_custom_call.1} parent=1 // pred_region
      %s61 = ssub.s32 1024, 1024
      %62 = vsyncadd [#allocation11], %s61
      %s63 = sshll.u32 [#allocation10], 4
      %s64 = int_to_ptr.vmem [resolvable:$true] %s63
      %69 = dma.hbm_to_vmem [thread:$0]  %s4, 1024, %s64, [#allocation11], 64, 64, 4
    $region21: #{tpu_custom_call.1} parent=1 // pred_fallthru
      _
    // Predicated region
    $region22: #{tpu_custom_call.1} parent=1 // pred_check
      _
    $region23: #{tpu_custom_call.1} parent=1 // pred_check_branch
      %71 = sbr.rel (0) target = $region25
    $region24: #{tpu_custom_call.1} parent=1 // pred_region
      %s73 = ssub.s32 1024, 1024
      %74 = vsyncadd [#allocation11], %s73
      %s75 = sshll.u32 [#allocation12], 4
      %s76 = int_to_ptr.vmem [resolvable:$true] %s75
      %81 = dma.hbm_to_vmem [thread:$0]  %s5, 1024, %s76, [#allocation11], 64, 64, 4
    $region25: #{tpu_custom_call.1} parent=1 // pred_fallthru
      _
    // Predicated region
    $region26: #{tpu_custom_call.1} parent=1 // pred_check
      _
    $region27: #{tpu_custom_call.1} parent=1 // pred_check_branch
      %83 = sbr.rel (0) target = $region29
    $region28: #{tpu_custom_call.1} parent=1 // pred_region
      _
    $region29: #{tpu_custom_call.1} parent=1 // pred_fallthru
      _
    // Predicated region
    $region30: #{tpu_custom_call.1} parent=1 // pred_check
      _
    $region31: #{tpu_custom_call.1} parent=1 // pred_check_branch
      %85 = sbr.rel (0) target = $region33
    $region32: #{tpu_custom_call.1} parent=1 // pred_region
      %s87 = ssub.s32 1024, 1024
      %88 = vsyncadd [#allocation14], %s87
      %s89 = sshll.u32 [#allocation13], 4
      %s90 = int_to_ptr.vmem [resolvable:$true] %s89
      %95 = dma.hbm_to_vmem [thread:$0]  %s7, 1024, %s90, [#allocation14], 64, 64, 4
    $region33: #{tpu_custom_call.1} parent=1 // pred_fallthru
      _
    // Predicated region
    $region34: #{tpu_custom_call.1} parent=1 // pred_check
      _
    $region35: #{tpu_custom_call.1} parent=1 // pred_check_branch
      %97 = sbr.rel (0) target = $region37
    $region36: #{tpu_custom_call.1} parent=1 // pred_region
      %s99 = ssub.s32 1024, 1024
      %100 = vsyncadd [#allocation14], %s99
      %s101 = sshll.u32 [#allocation15], 4
      %s102 = int_to_ptr.vmem [resolvable:$true] %s101
      %107 = dma.hbm_to_vmem [thread:$0]  %s8, 1024, %s102, [#allocation14], 64, 64, 4
    $region37: #{tpu_custom_call.1} parent=1 // pred_fallthru
      _
    // Predicated region
    $region38: #{tpu_custom_call.1} parent=1 // pred_check
      _
    $region39: #{tpu_custom_call.1} parent=1 // pred_check_branch
      %109 = sbr.rel (0) target = $region41
    $region40: #{tpu_custom_call.1} parent=1 // pred_region
      _
    $region41: #{tpu_custom_call.1} parent=1 // pred_fallthru
      _
    // Predicated region
    $region42: #{tpu_custom_call.1} parent=1 // pred_check
      _
    $region43: #{tpu_custom_call.1} parent=1 // pred_check_branch
      %111 = sbr.rel (0) target = $region45
    $region44: #{tpu_custom_call.1} parent=1 // pred_region
      %112 = dma.done [#allocation5], 1024
    $region45: #{tpu_custom_call.1} parent=1 // pred_fallthru
      _
    // Predicated region
    $region46: #{tpu_custom_call.1} parent=1 // pred_check
      _
    $region47: #{tpu_custom_call.1} parent=1 // pred_check_branch
      %114 = sbr.rel (0) target = $region49
    $region48: #{tpu_custom_call.1} parent=1 // pred_region
      %115 = dma.done [#allocation8], 128
    $region49: #{tpu_custom_call.1} parent=1 // pred_fallthru
      _
    // Predicated region
    $region50: #{tpu_custom_call.1} parent=1 // pred_check
      _
    $region51: #{tpu_custom_call.1} parent=1 // pred_check_branch
      %117 = sbr.rel (0) target = $region53
    $region52: #{tpu_custom_call.1} parent=1 // pred_region
      %118 = dma.done [#allocation8], 8192
    $region53: #{tpu_custom_call.1} parent=1 // pred_fallthru
      _
    // Predicated region
    $region54: #{tpu_custom_call.1} parent=1 // pred_check
      _
    $region55: #{tpu_custom_call.1} parent=1 // pred_check_branch
      %120 = sbr.rel (0) target = $region57
    $region56: #{tpu_custom_call.1} parent=1 // pred_region
      %121 = dma.done [#allocation11], 1024
    $region57: #{tpu_custom_call.1} parent=1 // pred_fallthru
      _
    // Predicated region
    $region58: #{tpu_custom_call.1} parent=1 // pred_check
      _
    $region59: #{tpu_custom_call.1} parent=1 // pred_check_branch
      %123 = sbr.rel (0) target = $region61
    $region60: #{tpu_custom_call.1} parent=1 // pred_region
      %124 = dma.done [#allocation11], 1024
    $region61: #{tpu_custom_call.1} parent=1 // pred_fallthru
      _
    // Predicated region
    $region62: #{tpu_custom_call.1} parent=1 // pred_check
      _
    $region63: #{tpu_custom_call.1} parent=1 // pred_check_branch
      %126 = sbr.rel (0) target = $region65
    $region64: #{tpu_custom_call.1} parent=1 // pred_region
      %127 = dma.done [#allocation14], 1024
    $region65: #{tpu_custom_call.1} parent=1 // pred_fallthru
      _
    // Predicated region
    $region66: #{tpu_custom_call.1} parent=1 // pred_check
      _
    $region67: #{tpu_custom_call.1} parent=1 // pred_check_branch
      %129 = sbr.rel (0) target = $region69
    $region68: #{tpu_custom_call.1} parent=1 // pred_region
      %130 = dma.done [#allocation14], 1024
    $region69: #{tpu_custom_call.1} parent=1 // pred_fallthru
      _
    %v132 = vld [vmem:[#allocation4] sm:$0xff]
    %v133 = vld [vmem:[#allocation4 + $0x8] sm:$0xff]
    %v134 = vld [vmem:[#allocation4 + $0x10] sm:$0xff]
    %v135 = vld [vmem:[#allocation4 + $0x18] sm:$0xff]
    %v136 = vld [vmem:[#allocation4 + $0x20] sm:$0xff]
    %v137 = vld [vmem:[#allocation4 + $0x28] sm:$0xff]
    %v138 = vld [vmem:[#allocation4 + $0x30] sm:$0xff]
    %v139 = vld [vmem:[#allocation4 + $0x38] sm:$0xff]
    %v140 = vld [vmem:[#allocation9] sm:$0xf]
    %v141 = vld [vmem:[#allocation9 + $0x4] sm:$0xf]
    %v142 = vld [vmem:[#allocation9 + $0x8] sm:$0xf]
    %v143 = vld [vmem:[#allocation9 + $0xc] sm:$0xf]
    %v144 = vld [vmem:[#allocation9 + $0x10] sm:$0xf]
    %v145 = vld [vmem:[#allocation9 + $0x14] sm:$0xf]
    %v146 = vld [vmem:[#allocation9 + $0x18] sm:$0xf]
    %v147 = vld [vmem:[#allocation9 + $0x1c] sm:$0xf]
    %v148 = vld [vmem:[#allocation9 + $0x20] sm:$0xf]
    %v149 = vld [vmem:[#allocation9 + $0x24] sm:$0xf]
    %v150 = vld [vmem:[#allocation9 + $0x28] sm:$0xf]
    %v151 = vld [vmem:[#allocation9 + $0x2c] sm:$0xf]
    %v152 = vld [vmem:[#allocation9 + $0x30] sm:$0xf]
    %v153 = vld [vmem:[#allocation9 + $0x34] sm:$0xf]
    %v154 = vld [vmem:[#allocation9 + $0x38] sm:$0xf]
    %v155 = vld [vmem:[#allocation9 + $0x3c] sm:$0xf]
    %v156 = vld [vmem:[#allocation9 + $0x40] sm:$0xf]
    %v157 = vld [vmem:[#allocation9 + $0x44] sm:$0xf]
    %v158 = vld [vmem:[#allocation9 + $0x48] sm:$0xf]
    %v159 = vld [vmem:[#allocation9 + $0x4c] sm:$0xf]
    %v160 = vld [vmem:[#allocation9 + $0x50] sm:$0xf]
    %v161 = vld [vmem:[#allocation9 + $0x54] sm:$0xf]
    %v162 = vld [vmem:[#allocation9 + $0x58] sm:$0xf]
    %v163 = vld [vmem:[#allocation9 + $0x5c] sm:$0xf]
    %v164 = vld [vmem:[#allocation9 + $0x60] sm:$0xf]
    %v165 = vld [vmem:[#allocation9 + $0x64] sm:$0xf]
    %v166 = vld [vmem:[#allocation9 + $0x68] sm:$0xf]
    %v167 = vld [vmem:[#allocation9 + $0x6c] sm:$0xf]
    %v168 = vld [vmem:[#allocation9 + $0x70] sm:$0xf]
    %v169 = vld [vmem:[#allocation9 + $0x74] sm:$0xf]
    %v170 = vld [vmem:[#allocation9 + $0x78] sm:$0xf]
    %v171 = vld [vmem:[#allocation9 + $0x7c] sm:$0xf]
    %v172 = vld [vmem:[#allocation9 + $0x80] sm:$0xf]
    %v173 = vld [vmem:[#allocation9 + $0x84] sm:$0xf]
    %v174 = vld [vmem:[#allocation9 + $0x88] sm:$0xf]
    %v175 = vld [vmem:[#allocation9 + $0x8c] sm:$0xf]
    %v176 = vld [vmem:[#allocation9 + $0x90] sm:$0xf]
    %v177 = vld [vmem:[#allocation9 + $0x94] sm:$0xf]
    %v178 = vld [vmem:[#allocation9 + $0x98] sm:$0xf]
    %v179 = vld [vmem:[#allocation9 + $0x9c] sm:$0xf]
    %v180 = vld [vmem:[#allocation9 + $0xa0] sm:$0xf]
    %v181 = vld [vmem:[#allocation9 + $0xa4] sm:$0xf]
    %v182 = vld [vmem:[#allocation9 + $0xa8] sm:$0xf]
    %v183 = vld [vmem:[#allocation9 + $0xac] sm:$0xf]
    %v184 = vld [vmem:[#allocation9 + $0xb0] sm:$0xf]
    %v185 = vld [vmem:[#allocation9 + $0xb4] sm:$0xf]
    %v186 = vld [vmem:[#allocation9 + $0xb8] sm:$0xf]
    %v187 = vld [vmem:[#allocation9 + $0xbc] sm:$0xf]
    %v188 = vld [vmem:[#allocation9 + $0xc0] sm:$0xf]
    %v189 = vld [vmem:[#allocation9 + $0xc4] sm:$0xf]
    %v190 = vld [vmem:[#allocation9 + $0xc8] sm:$0xf]
    %v191 = vld [vmem:[#allocation9 + $0xcc] sm:$0xf]
    %v192 = vld [vmem:[#allocation9 + $0xd0] sm:$0xf]
    %v193 = vld [vmem:[#allocation9 + $0xd4] sm:$0xf]
    %v194 = vld [vmem:[#allocation9 + $0xd8] sm:$0xf]
    %v195 = vld [vmem:[#allocation9 + $0xdc] sm:$0xf]
    %v196 = vld [vmem:[#allocation9 + $0xe0] sm:$0xf]
    %v197 = vld [vmem:[#allocation9 + $0xe4] sm:$0xf]
    %v198 = vld [vmem:[#allocation9 + $0xe8] sm:$0xf]
    %v199 = vld [vmem:[#allocation9 + $0xec] sm:$0xf]
    %v200 = vld [vmem:[#allocation9 + $0xf0] sm:$0xf]
    %v201 = vld [vmem:[#allocation9 + $0xf4] sm:$0xf]
    %v202 = vld [vmem:[#allocation9 + $0xf8] sm:$0xf]
    %v203 = vld [vmem:[#allocation9 + $0xfc] sm:$0xf]
    %v204 = vld [vmem:[#allocation9 + $0x100] sm:$0xf]
    %v205 = vld [vmem:[#allocation9 + $0x104] sm:$0xf]
    %v206 = vld [vmem:[#allocation9 + $0x108] sm:$0xf]
    %v207 = vld [vmem:[#allocation9 + $0x10c] sm:$0xf]
    %v208 = vld [vmem:[#allocation9 + $0x110] sm:$0xf]
    %v209 = vld [vmem:[#allocation9 + $0x114] sm:$0xf]
    %v210 = vld [vmem:[#allocation9 + $0x118] sm:$0xf]
    %v211 = vld [vmem:[#allocation9 + $0x11c] sm:$0xf]
    %v212 = vld [vmem:[#allocation9 + $0x120] sm:$0xf]
    %v213 = vld [vmem:[#allocation9 + $0x124] sm:$0xf]
    %v214 = vld [vmem:[#allocation9 + $0x128] sm:$0xf]
    %v215 = vld [vmem:[#allocation9 + $0x12c] sm:$0xf]
    %v216 = vld [vmem:[#allocation9 + $0x130] sm:$0xf]
    %v217 = vld [vmem:[#allocation9 + $0x134] sm:$0xf]
    %v218 = vld [vmem:[#allocation9 + $0x138] sm:$0xf]
    %v219 = vld [vmem:[#allocation9 + $0x13c] sm:$0xf]
    %v220 = vld [vmem:[#allocation9 + $0x140] sm:$0xf]
    %v221 = vld [vmem:[#allocation9 + $0x144] sm:$0xf]
    %v222 = vld [vmem:[#allocation9 + $0x148] sm:$0xf]
    %v223 = vld [vmem:[#allocation9 + $0x14c] sm:$0xf]
    %v224 = vld [vmem:[#allocation9 + $0x150] sm:$0xf]
    %v225 = vld [vmem:[#allocation9 + $0x154] sm:$0xf]
    %v226 = vld [vmem:[#allocation9 + $0x158] sm:$0xf]
    %v227 = vld [vmem:[#allocation9 + $0x15c] sm:$0xf]
    %v228 = vld [vmem:[#allocation9 + $0x160] sm:$0xf]
    %v229 = vld [vmem:[#allocation9 + $0x164] sm:$0xf]
    %v230 = vld [vmem:[#allocation9 + $0x168] sm:$0xf]
    %v231 = vld [vmem:[#allocation9 + $0x16c] sm:$0xf]
    %v232 = vld [vmem:[#allocation9 + $0x170] sm:$0xf]
    %v233 = vld [vmem:[#allocation9 + $0x174] sm:$0xf]
    %v234 = vld [vmem:[#allocation9 + $0x178] sm:$0xf]
    %v235 = vld [vmem:[#allocation9 + $0x17c] sm:$0xf]
    %v236 = vld [vmem:[#allocation9 + $0x180] sm:$0xf]
    %v237 = vld [vmem:[#allocation9 + $0x184] sm:$0xf]
    %v238 = vld [vmem:[#allocation9 + $0x188] sm:$0xf]
    %v239 = vld [vmem:[#allocation9 + $0x18c] sm:$0xf]
    %v240 = vld [vmem:[#allocation9 + $0x190] sm:$0xf]
    %v241 = vld [vmem:[#allocation9 + $0x194] sm:$0xf]
    %v242 = vld [vmem:[#allocation9 + $0x198] sm:$0xf]
    %v243 = vld [vmem:[#allocation9 + $0x19c] sm:$0xf]
    %v244 = vld [vmem:[#allocation9 + $0x1a0] sm:$0xf]
    %v245 = vld [vmem:[#allocation9 + $0x1a4] sm:$0xf]
    %v246 = vld [vmem:[#allocation9 + $0x1a8] sm:$0xf]
    %v247 = vld [vmem:[#allocation9 + $0x1ac] sm:$0xf]
    %v248 = vld [vmem:[#allocation9 + $0x1b0] sm:$0xf]
    %v249 = vld [vmem:[#allocation9 + $0x1b4] sm:$0xf]
    %v250 = vld [vmem:[#allocation9 + $0x1b8] sm:$0xf]
    %v251 = vld [vmem:[#allocation9 + $0x1bc] sm:$0xf]
    %v252 = vld [vmem:[#allocation9 + $0x1c0] sm:$0xf]
    %v253 = vld [vmem:[#allocation9 + $0x1c4] sm:$0xf]
    %v254 = vld [vmem:[#allocation9 + $0x1c8] sm:$0xf]
    %v255 = vld [vmem:[#allocation9 + $0x1cc] sm:$0xf]
    %v256 = vld [vmem:[#allocation9 + $0x1d0] sm:$0xf]
    %v257 = vld [vmem:[#allocation9 + $0x1d4] sm:$0xf]
    %v258 = vld [vmem:[#allocation9 + $0x1d8] sm:$0xf]
    %v259 = vld [vmem:[#allocation9 + $0x1dc] sm:$0xf]
    %v260 = vld [vmem:[#allocation9 + $0x1e0] sm:$0xf]
    %v261 = vld [vmem:[#allocation9 + $0x1e4] sm:$0xf]
    %v262 = vld [vmem:[#allocation9 + $0x1e8] sm:$0xf]
    %v263 = vld [vmem:[#allocation9 + $0x1ec] sm:$0xf]
    %v264 = vld [vmem:[#allocation9 + $0x1f0] sm:$0xf]
    %v265 = vld [vmem:[#allocation9 + $0x1f4] sm:$0xf]
    %v266 = vld [vmem:[#allocation9 + $0x1f8] sm:$0xf]
    %v267 = vld [vmem:[#allocation9 + $0x1fc] sm:$0xf]
    %v268 = vld [vmem:[%s3] sm:$0x1]
    %v270 = vlaneseq
    %v271 = vshrl.u32 %v270, 7
    %v272 = vsub.s32 0, %v271
    %v273 = vrot.slane %v268, %v272
    %v283 = vunpack.c.l.b16 %v132
    %v284 = vunpack.c.h.b16 %v132
    %v285 = vunpack.c.l.b16 %v133
    %v286 = vunpack.c.h.b16 %v133
    %v287 = vunpack.c.l.b16 %v134
    %v288 = vunpack.c.h.b16 %v134
    %v289 = vunpack.c.l.b16 %v135
    %v290 = vunpack.c.h.b16 %v135
    %v291 = vunpack.c.l.b16 %v136
    %v292 = vunpack.c.h.b16 %v136
    %v293 = vunpack.c.l.b16 %v137
    %v294 = vunpack.c.h.b16 %v137
    %v295 = vunpack.c.l.b16 %v138
    %v296 = vunpack.c.h.b16 %v138
    %v297 = vunpack.c.l.b16 %v139
    %v298 = vunpack.c.h.b16 %v139
    %v299 = vpack.c.b16 %v291, %v283
    %v300 = vpack.c.b16 %v292, %v284
    %v301 = vpack.c.b16 %v293, %v285
    %v302 = vpack.c.b16 %v294, %v286
    %v303 = vpack.c.b16 %v295, %v287
    %v304 = vpack.c.b16 %v296, %v288
    %v305 = vpack.c.b16 %v297, %v289
    %v306 = vpack.c.b16 %v298, %v290
    %v443 = vunpack.c.l.b16 %v140
    %v444 = vunpack.c.l.b16 %v141
    %v445 = vunpack.c.l.b16 %v142
    %v446 = vunpack.c.l.b16 %v143
    %v447 = vunpack.c.l.b16 %v144
    %v448 = vunpack.c.l.b16 %v145
    %v449 = vunpack.c.l.b16 %v146
    %v450 = vunpack.c.l.b16 %v147
    %v451 = vunpack.c.l.b16 %v148
    %v452 = vunpack.c.l.b16 %v149
    %v453 = vunpack.c.l.b16 %v150
    %v454 = vunpack.c.l.b16 %v151
    %v455 = vunpack.c.l.b16 %v152
    %v456 = vunpack.c.l.b16 %v153
    %v457 = vunpack.c.l.b16 %v154
    %v458 = vunpack.c.l.b16 %v155
    %v459 = vunpack.c.l.b16 %v156
    %v460 = vunpack.c.l.b16 %v157
    %v461 = vunpack.c.l.b16 %v158
    %v462 = vunpack.c.l.b16 %v159
    %v463 = vunpack.c.l.b16 %v160
    %v464 = vunpack.c.l.b16 %v161
    %v465 = vunpack.c.l.b16 %v162
    %v466 = vunpack.c.l.b16 %v163
    %v467 = vunpack.c.l.b16 %v164
    %v468 = vunpack.c.l.b16 %v165
    %v469 = vunpack.c.l.b16 %v166
    %v470 = vunpack.c.l.b16 %v167
    %v471 = vunpack.c.l.b16 %v168
    %v472 = vunpack.c.l.b16 %v169
    %v473 = vunpack.c.l.b16 %v170
    %v474 = vunpack.c.l.b16 %v171
    %v475 = vunpack.c.l.b16 %v172
    %v476 = vunpack.c.l.b16 %v173
    %v477 = vunpack.c.l.b16 %v174
    %v478 = vunpack.c.l.b16 %v175
    %v479 = vunpack.c.l.b16 %v176
    %v480 = vunpack.c.l.b16 %v177
    %v481 = vunpack.c.l.b16 %v178
    %v482 = vunpack.c.l.b16 %v179
    %v483 = vunpack.c.l.b16 %v180
    %v484 = vunpack.c.l.b16 %v181
    %v485 = vunpack.c.l.b16 %v182
    %v486 = vunpack.c.l.b16 %v183
    %v487 = vunpack.c.l.b16 %v184
    %v488 = vunpack.c.l.b16 %v185
    %v489 = vunpack.c.l.b16 %v186
    %v490 = vunpack.c.l.b16 %v187
    %v491 = vunpack.c.l.b16 %v188
    %v492 = vunpack.c.l.b16 %v189
    %v493 = vunpack.c.l.b16 %v190
    %v494 = vunpack.c.l.b16 %v191
    %v495 = vunpack.c.l.b16 %v192
    %v496 = vunpack.c.l.b16 %v193
    %v497 = vunpack.c.l.b16 %v194
    %v498 = vunpack.c.l.b16 %v195
    %v499 = vunpack.c.l.b16 %v196
    %v500 = vunpack.c.l.b16 %v197
    %v501 = vunpack.c.l.b16 %v198
    %v502 = vunpack.c.l.b16 %v199
    %v503 = vunpack.c.l.b16 %v200
    %v504 = vunpack.c.l.b16 %v201
    %v505 = vunpack.c.l.b16 %v202
    %v506 = vunpack.c.l.b16 %v203
    %v507 = vunpack.c.l.b16 %v204
    %v508 = vunpack.c.l.b16 %v205
    %v509 = vunpack.c.l.b16 %v206
    %v510 = vunpack.c.l.b16 %v207
    %v511 = vunpack.c.l.b16 %v208
    %v512 = vunpack.c.l.b16 %v209
    %v513 = vunpack.c.l.b16 %v210
    %v514 = vunpack.c.l.b16 %v211
    %v515 = vunpack.c.l.b16 %v212
    %v516 = vunpack.c.l.b16 %v213
    %v517 = vunpack.c.l.b16 %v214
    %v518 = vunpack.c.l.b16 %v215
    %v519 = vunpack.c.l.b16 %v216
    %v520 = vunpack.c.l.b16 %v217
    %v521 = vunpack.c.l.b16 %v218
    %v522 = vunpack.c.l.b16 %v219
    %v523 = vunpack.c.l.b16 %v220
    %v524 = vunpack.c.l.b16 %v221
    %v525 = vunpack.c.l.b16 %v222
    %v526 = vunpack.c.l.b16 %v223
    %v527 = vunpack.c.l.b16 %v224
    %v528 = vunpack.c.l.b16 %v225
    %v529 = vunpack.c.l.b16 %v226
    %v530 = vunpack.c.l.b16 %v227
    %v531 = vunpack.c.l.b16 %v228
    %v532 = vunpack.c.l.b16 %v229
    %v533 = vunpack.c.l.b16 %v230
    %v534 = vunpack.c.l.b16 %v231
    %v535 = vunpack.c.l.b16 %v232
    %v536 = vunpack.c.l.b16 %v233
    %v537 = vunpack.c.l.b16 %v234
    %v538 = vunpack.c.l.b16 %v235
    %v539 = vunpack.c.l.b16 %v236
    %v540 = vunpack.c.l.b16 %v237
    %v541 = vunpack.c.l.b16 %v238
    %v542 = vunpack.c.l.b16 %v239
    %v543 = vunpack.c.l.b16 %v240
    %v544 = vunpack.c.l.b16 %v241
    %v545 = vunpack.c.l.b16 %v242
    %v546 = vunpack.c.l.b16 %v243
    %v547 = vunpack.c.l.b16 %v244
    %v548 = vunpack.c.l.b16 %v245
    %v549 = vunpack.c.l.b16 %v246
    %v550 = vunpack.c.l.b16 %v247
    %v551 = vunpack.c.l.b16 %v248
    %v552 = vunpack.c.l.b16 %v249
    %v553 = vunpack.c.l.b16 %v250
    %v554 = vunpack.c.l.b16 %v251
    %v555 = vunpack.c.l.b16 %v252
    %v556 = vunpack.c.l.b16 %v253
    %v557 = vunpack.c.l.b16 %v254
    %v558 = vunpack.c.l.b16 %v255
    %v559 = vunpack.c.l.b16 %v256
    %v560 = vunpack.c.l.b16 %v257
    %v561 = vunpack.c.l.b16 %v258
    %v562 = vunpack.c.l.b16 %v259
    %v563 = vunpack.c.l.b16 %v260
    %v564 = vunpack.c.l.b16 %v261
    %v565 = vunpack.c.l.b16 %v262
    %v566 = vunpack.c.l.b16 %v263
    %v567 = vunpack.c.l.b16 %v264
    %v568 = vunpack.c.l.b16 %v265
    %v569 = vunpack.c.l.b16 %v266
    %v570 = vunpack.c.l.b16 %v267
    %v571 = vpack.c.b16 %v444, %v443
    %v572 = vpack.c.b16 %v446, %v445
    %v573 = vpack.c.b16 %v448, %v447
    %v574 = vpack.c.b16 %v450, %v449
    %v575 = vpack.c.b16 %v452, %v451
    %v576 = vpack.c.b16 %v454, %v453
    %v577 = vpack.c.b16 %v456, %v455
    %v578 = vpack.c.b16 %v458, %v457
    %v579 = vpack.c.b16 %v460, %v459
    %v580 = vpack.c.b16 %v462, %v461
    %v581 = vpack.c.b16 %v464, %v463
    %v582 = vpack.c.b16 %v466, %v465
    %v583 = vpack.c.b16 %v468, %v467
    %v584 = vpack.c.b16 %v470, %v469
    %v585 = vpack.c.b16 %v472, %v471
    %v586 = vpack.c.b16 %v474, %v473
    %v587 = vpack.c.b16 %v476, %v475
    %v588 = vpack.c.b16 %v478, %v477
    %v589 = vpack.c.b16 %v480, %v479
    %v590 = vpack.c.b16 %v482, %v481
    %v591 = vpack.c.b16 %v484, %v483
    %v592 = vpack.c.b16 %v486, %v485
    %v593 = vpack.c.b16 %v488, %v487
    %v594 = vpack.c.b16 %v490, %v489
    %v595 = vpack.c.b16 %v492, %v491
    %v596 = vpack.c.b16 %v494, %v493
    %v597 = vpack.c.b16 %v496, %v495
    %v598 = vpack.c.b16 %v498, %v497
    %v599 = vpack.c.b16 %v500, %v499
    %v600 = vpack.c.b16 %v502, %v501
    %v601 = vpack.c.b16 %v504, %v503
    %v602 = vpack.c.b16 %v506, %v505
    %v603 = vpack.c.b16 %v508, %v507
    %v604 = vpack.c.b16 %v510, %v509
    %v605 = vpack.c.b16 %v512, %v511
    %v606 = vpack.c.b16 %v514, %v513
    %v607 = vpack.c.b16 %v516, %v515
    %v608 = vpack.c.b16 %v518, %v517
    %v609 = vpack.c.b16 %v520, %v519
    %v610 = vpack.c.b16 %v522, %v521
    %v611 = vpack.c.b16 %v524, %v523
    %v612 = vpack.c.b16 %v526, %v525
    %v613 = vpack.c.b16 %v528, %v527
    %v614 = vpack.c.b16 %v530, %v529
    %v615 = vpack.c.b16 %v532, %v531
    %v616 = vpack.c.b16 %v534, %v533
    %v617 = vpack.c.b16 %v536, %v535
    %v618 = vpack.c.b16 %v538, %v537
    %v619 = vpack.c.b16 %v540, %v539
    %v620 = vpack.c.b16 %v542, %v541
    %v621 = vpack.c.b16 %v544, %v543
    %v622 = vpack.c.b16 %v546, %v545
    %v623 = vpack.c.b16 %v548, %v547
    %v624 = vpack.c.b16 %v550, %v549
    %v625 = vpack.c.b16 %v552, %v551
    %v626 = vpack.c.b16 %v554, %v553
    %v627 = vpack.c.b16 %v556, %v555
    %v628 = vpack.c.b16 %v558, %v557
    %v629 = vpack.c.b16 %v560, %v559
    %v630 = vpack.c.b16 %v562, %v561
    %v631 = vpack.c.b16 %v564, %v563
    %v632 = vpack.c.b16 %v566, %v565
    %v633 = vpack.c.b16 %v568, %v567
    %v634 = vpack.c.b16 %v570, %v569
    %699 = vmatprep.subr.bf16.mxu0 0
    %700 = vmatpush1.bf16.msra.mxu0 %v578
    %701 = vmatprep.subr.bf16.mxu0 0
    %702 = vmatpush1.bf16.msra.mxu0 %v577
    %703 = vmatprep.subr.bf16.mxu0 0
    %704 = vmatpush1.bf16.msra.mxu0 %v576
    %705 = vmatprep.subr.bf16.mxu0 0
    %706 = vmatpush1.bf16.msra.mxu0 %v575
    %707 = vmatprep.subr.bf16.mxu0 0
    %708 = vmatpush1.bf16.msra.mxu0 %v574
    %709 = vmatprep.subr.bf16.mxu0 0
    %710 = vmatpush1.bf16.msra.mxu0 %v573
    %711 = vmatprep.subr.bf16.mxu0 0
    %712 = vmatpush1.bf16.msra.mxu0 %v572
    %713 = vmatprep.subr.bf16.mxu0 0
    %714 = vmatpush1.bf16.msra.mxu0 %v571
    %715 = vmatprep.subr.bf16.mxu0 0
    %716 = vmatpush2.bf16.msra.mxu0 %v586
    %717 = vmatprep.subr.bf16.mxu0 0
    %718 = vmatpush2.bf16.msra.mxu0 %v585
    %719 = vmatprep.subr.bf16.mxu0 0
    %720 = vmatpush2.bf16.msra.mxu0 %v584
    %721 = vmatprep.subr.bf16.mxu0 0
    %722 = vmatpush2.bf16.msra.mxu0 %v583
    %723 = vmatprep.subr.bf16.mxu0 0
    %724 = vmatpush2.bf16.msra.mxu0 %v582
    %725 = vmatprep.subr.bf16.mxu0 0
    %726 = vmatpush2.bf16.msra.mxu0 %v581
    %727 = vmatprep.subr.bf16.mxu0 0
    %728 = vmatpush2.bf16.msra.mxu0 %v580
    %729 = vmatprep.subr.bf16.mxu0 0
    %730 = vmatpush2.bf16.msra.mxu0 %v579
    %731 = vmatprep.mubr.bf16.mxu0 %v300
    %732 = vmatmul.mubr.bf16.gmra.mxu0 %v299
    %v733 = vpop.f32.mrf.mxu0
    %v734 = vadd.f32 %v273, %v733
    %v735 = vpop.f32.mrf.mxu0
    %v736 = vpop.f32.mrf.mxu0
    %v737 = vadd.f32 %v273, %v736
    %v738 = vpop.f32.mrf.mxu0
    %739 = vdwg.mxu0
    %740 = vmatprep.subr.bf16.mxu0 0
    %741 = vmatpush1.bf16.msra.mxu0 %v594
    %742 = vmatprep.subr.bf16.mxu0 0
    %743 = vmatpush1.bf16.msra.mxu0 %v593
    %744 = vmatprep.subr.bf16.mxu0 0
    %745 = vmatpush1.bf16.msra.mxu0 %v592
    %746 = vmatprep.subr.bf16.mxu0 0
    %747 = vmatpush1.bf16.msra.mxu0 %v591
    %748 = vmatprep.subr.bf16.mxu0 0
    %749 = vmatpush1.bf16.msra.mxu0 %v590
    %750 = vmatprep.subr.bf16.mxu0 0
    %751 = vmatpush1.bf16.msra.mxu0 %v589
    %752 = vmatprep.subr.bf16.mxu0 0
    %753 = vmatpush1.bf16.msra.mxu0 %v588
    %754 = vmatprep.subr.bf16.mxu0 0
    %755 = vmatpush1.bf16.msra.mxu0 %v587
    %756 = vmatprep.subr.bf16.mxu0 0
    %757 = vmatpush2.bf16.msra.mxu0 %v602
    %758 = vmatprep.subr.bf16.mxu0 0
    %759 = vmatpush2.bf16.msra.mxu0 %v601
    %760 = vmatprep.subr.bf16.mxu0 0
    %761 = vmatpush2.bf16.msra.mxu0 %v600
    %762 = vmatprep.subr.bf16.mxu0 0
    %763 = vmatpush2.bf16.msra.mxu0 %v599
    %764 = vmatprep.subr.bf16.mxu0 0
    %765 = vmatpush2.bf16.msra.mxu0 %v598
    %766 = vmatprep.subr.bf16.mxu0 0
    %767 = vmatpush2.bf16.msra.mxu0 %v597
    %768 = vmatprep.subr.bf16.mxu0 0
    %769 = vmatpush2.bf16.msra.mxu0 %v596
    %770 = vmatprep.subr.bf16.mxu0 0
    %771 = vmatpush2.bf16.msra.mxu0 %v595
    %772 = vmatprep.mubr.bf16.mxu0 %v302
    %773 = vmatmul.mubr.bf16.gmra.mxu0 %v301
    %v774 = vpop.f32.mrf.mxu0
    %v775 = vadd.f32 %v734, %v774
    %v776 = vpop.f32.mrf.mxu0
    %v777 = vpop.f32.mrf.mxu0
    %v778 = vadd.f32 %v737, %v777
    %v779 = vpop.f32.mrf.mxu0
    %780 = vdwg.mxu0
    %781 = vmatprep.subr.bf16.mxu0 0
    %782 = vmatpush1.bf16.msra.mxu0 %v610
    %783 = vmatprep.subr.bf16.mxu0 0
    %784 = vmatpush1.bf16.msra.mxu0 %v609
    %785 = vmatprep.subr.bf16.mxu0 0
    %786 = vmatpush1.bf16.msra.mxu0 %v608
    %787 = vmatprep.subr.bf16.mxu0 0
    %788 = vmatpush1.bf16.msra.mxu0 %v607
    %789 = vmatprep.subr.bf16.mxu0 0
    %790 = vmatpush1.bf16.msra.mxu0 %v606
    %791 = vmatprep.subr.bf16.mxu0 0
    %792 = vmatpush1.bf16.msra.mxu0 %v605
    %793 = vmatprep.subr.bf16.mxu0 0
    %794 = vmatpush1.bf16.msra.mxu0 %v604
    %795 = vmatprep.subr.bf16.mxu0 0
    %796 = vmatpush1.bf16.msra.mxu0 %v603
    %797 = vmatprep.subr.bf16.mxu0 0
    %798 = vmatpush2.bf16.msra.mxu0 %v618
    %799 = vmatprep.subr.bf16.mxu0 0
    %800 = vmatpush2.bf16.msra.mxu0 %v617
    %801 = vmatprep.subr.bf16.mxu0 0
    %802 = vmatpush2.bf16.msra.mxu0 %v616
    %803 = vmatprep.subr.bf16.mxu0 0
    %804 = vmatpush2.bf16.msra.mxu0 %v615
    %805 = vmatprep.subr.bf16.mxu0 0
    %806 = vmatpush2.bf16.msra.mxu0 %v614
    %807 = vmatprep.subr.bf16.mxu0 0
    %808 = vmatpush2.bf16.msra.mxu0 %v613
    %809 = vmatprep.subr.bf16.mxu0 0
    %810 = vmatpush2.bf16.msra.mxu0 %v612
    %811 = vmatprep.subr.bf16.mxu0 0
    %812 = vmatpush2.bf16.msra.mxu0 %v611
    %813 = vmatprep.mubr.bf16.mxu0 %v304
    %814 = vmatmul.mubr.bf16.gmra.mxu0 %v303
    %v815 = vpop.f32.mrf.mxu0
    %v816 = vadd.f32 %v775, %v815
    %v817 = vpop.f32.mrf.mxu0
    %v818 = vpop.f32.mrf.mxu0
    %v819 = vadd.f32 %v778, %v818
    %v820 = vpop.f32.mrf.mxu0
    %821 = vdwg.mxu0
    %822 = vmatprep.subr.bf16.mxu0 0
    %823 = vmatpush1.bf16.msra.mxu0 %v626
    %824 = vmatprep.subr.bf16.mxu0 0
    %825 = vmatpush1.bf16.msra.mxu0 %v625
    %826 = vmatprep.subr.bf16.mxu0 0
    %827 = vmatpush1.bf16.msra.mxu0 %v624
    %828 = vmatprep.subr.bf16.mxu0 0
    %829 = vmatpush1.bf16.msra.mxu0 %v623
    %830 = vmatprep.subr.bf16.mxu0 0
    %831 = vmatpush1.bf16.msra.mxu0 %v622
    %832 = vmatprep.subr.bf16.mxu0 0
    %833 = vmatpush1.bf16.msra.mxu0 %v621
    %834 = vmatprep.subr.bf16.mxu0 0
    %835 = vmatpush1.bf16.msra.mxu0 %v620
    %836 = vmatprep.subr.bf16.mxu0 0
    %837 = vmatpush1.bf16.msra.mxu0 %v619
    %838 = vmatprep.subr.bf16.mxu0 0
    %839 = vmatpush2.bf16.msra.mxu0 %v634
    %840 = vmatprep.subr.bf16.mxu0 0
    %841 = vmatpush2.bf16.msra.mxu0 %v633
    %842 = vmatprep.subr.bf16.mxu0 0
    %843 = vmatpush2.bf16.msra.mxu0 %v632
    %844 = vmatprep.subr.bf16.mxu0 0
    %845 = vmatpush2.bf16.msra.mxu0 %v631
    %846 = vmatprep.subr.bf16.mxu0 0
    %847 = vmatpush2.bf16.msra.mxu0 %v630
    %848 = vmatprep.subr.bf16.mxu0 0
    %849 = vmatpush2.bf16.msra.mxu0 %v629
    %850 = vmatprep.subr.bf16.mxu0 0
    %851 = vmatpush2.bf16.msra.mxu0 %v628
    %852 = vmatprep.subr.bf16.mxu0 0
    %853 = vmatpush2.bf16.msra.mxu0 %v627
    %854 = vmatprep.mubr.bf16.mxu0 %v306
    %855 = vmatmul.mubr.bf16.gmra.mxu0 %v305
    %v856 = vpop.f32.mrf.mxu0
    %v857 = vadd.f32 %v816, %v856
    %v858 = vpop.f32.mrf.mxu0
    %v859 = vpop.f32.mrf.mxu0
    %v860 = vadd.f32 %v819, %v859
    %v861 = vpop.f32.mrf.mxu0
    %862 = vdwg.mxu0
    %s863 = smul.u32 0, 16
    %v864 = vld [vmem:[%s6] sm:$0x1]
    %v865 = vld [vmem:[%s6 + $0x1] sm:$0x1]
    %v866 = vld [vmem:[%s6 + $0x2] sm:$0x1]
    %v867 = vld [vmem:[%s6 + $0x3] sm:$0x1]
    %v868 = vpack.c.bf16 %v860, %v857
    %v869 = vld [vmem:[#allocation10] sm:$0xf]
    %v870 = vld [vmem:[#allocation10 + $0x4] sm:$0xf]
    %v871 = vld [vmem:[#allocation10 + $0x8] sm:$0xf]
    %v872 = vld [vmem:[#allocation10 + $0xc] sm:$0xf]
    %v873 = vld [vmem:[#allocation10 + $0x10] sm:$0xf]
    %v874 = vld [vmem:[#allocation10 + $0x14] sm:$0xf]
    %v875 = vld [vmem:[#allocation10 + $0x18] sm:$0xf]
    %v876 = vld [vmem:[#allocation10 + $0x1c] sm:$0xf]
    %v877 = vld [vmem:[#allocation10 + $0x20] sm:$0xf]
    %v878 = vld [vmem:[#allocation10 + $0x24] sm:$0xf]
    %v879 = vld [vmem:[#allocation10 + $0x28] sm:$0xf]
    %v880 = vld [vmem:[#allocation10 + $0x2c] sm:$0xf]
    %v881 = vld [vmem:[#allocation10 + $0x30] sm:$0xf]
    %v882 = vld [vmem:[#allocation10 + $0x34] sm:$0xf]
    %v883 = vld [vmem:[#allocation10 + $0x38] sm:$0xf]
    %v884 = vld [vmem:[#allocation10 + $0x3c] sm:$0xf]
    %v885 = vlaneseq
    %v886 = vshrl.u32 %v885, 7
    %v887 = vsub.s32 0, %v886
    %v888 = vrot.slane %v864, %v887
    %v905 = vunpack.c.l.b16 %v869
    %v906 = vunpack.c.l.b16 %v870
    %v907 = vunpack.c.l.b16 %v871
    %v908 = vunpack.c.l.b16 %v872
    %v909 = vunpack.c.l.b16 %v873
    %v910 = vunpack.c.l.b16 %v874
    %v911 = vunpack.c.l.b16 %v875
    %v912 = vunpack.c.l.b16 %v876
    %v913 = vunpack.c.l.b16 %v877
    %v914 = vunpack.c.l.b16 %v878
    %v915 = vunpack.c.l.b16 %v879
    %v916 = vunpack.c.l.b16 %v880
    %v917 = vunpack.c.l.b16 %v881
    %v918 = vunpack.c.l.b16 %v882
    %v919 = vunpack.c.l.b16 %v883
    %v920 = vunpack.c.l.b16 %v884
    %v921 = vpack.c.b16 %v906, %v905
    %v922 = vpack.c.b16 %v908, %v907
    %v923 = vpack.c.b16 %v910, %v909
    %v924 = vpack.c.b16 %v912, %v911
    %v925 = vpack.c.b16 %v914, %v913
    %v926 = vpack.c.b16 %v916, %v915
    %v927 = vpack.c.b16 %v918, %v917
    %v928 = vpack.c.b16 %v920, %v919
    %937 = vmatprep.subr.bf16.mxu0 0
    %938 = vmatpush1.bf16.msra.mxu0 %v928
    %939 = vmatprep.subr.bf16.mxu0 0
    %940 = vmatpush1.bf16.msra.mxu0 %v927
    %941 = vmatprep.subr.bf16.mxu0 0
    %942 = vmatpush1.bf16.msra.mxu0 %v926
    %943 = vmatprep.subr.bf16.mxu0 0
    %944 = vmatpush1.bf16.msra.mxu0 %v925
    %945 = vmatprep.subr.bf16.mxu0 0
    %946 = vmatpush1.bf16.msra.mxu0 %v924
    %947 = vmatprep.subr.bf16.mxu0 0
    %948 = vmatpush1.bf16.msra.mxu0 %v923
    %949 = vmatprep.subr.bf16.mxu0 0
    %950 = vmatpush1.bf16.msra.mxu0 %v922
    %951 = vmatprep.subr.bf16.mxu0 0
    %952 = vmatpush1.bf16.msra.mxu0 %v921
    %953 = vmatprep.subr.bf16.mxu0 0
    %954 = vmatpush2.bf16.msra.mxu0 0
    %955 = vmatprep.subr.bf16.mxu0 0
    %956 = vmatpush2.bf16.msra.mxu0 0
    %957 = vmatprep.subr.bf16.mxu0 0
    %958 = vmatpush2.bf16.msra.mxu0 0
    %959 = vmatprep.subr.bf16.mxu0 0
    %960 = vmatpush2.bf16.msra.mxu0 0
    %961 = vmatprep.subr.bf16.mxu0 0
    %962 = vmatpush2.bf16.msra.mxu0 0
    %963 = vmatprep.subr.bf16.mxu0 0
    %964 = vmatpush2.bf16.msra.mxu0 0
    %965 = vmatprep.subr.bf16.mxu0 0
    %966 = vmatpush2.bf16.msra.mxu0 0
    %967 = vmatprep.subr.bf16.mxu0 0
    %968 = vmatpush2.bf16.msra.mxu0 0
    %969 = vmatprep.mubr.bf16.mxu0 0
    %970 = vmatmul.mubr.bf16.gmra.mxu0 %v868
    %v971 = vpop.f32.mrf.mxu0
    %v972 = vadd.f32 %v888, %v971
    %v973 = vpop.f32.mrf.mxu0
    %v974 = vpop.f32.mrf.mxu0
    %v975 = vadd.f32 %v888, %v974
    %v976 = vpop.f32.mrf.mxu0
    %977 = vdwg.mxu0
    %v978 = vmul.f32 %v972, 0.5
    %v979 = vmul.f32 %v975, 0.5
    %v980 = vmul.f32 %v972, 0.70710677
    %v981 = vmul.f32 %v975, 0.70710677
    %v982 = verf.f32.pop %v980
    %v983 = verf.f32.pop %v981
    %v984 = vadd.f32 %v982, 1.0
    %v985 = vadd.f32 %v983, 1.0
    %v986 = vmul.f32 %v978, %v984
    %v987 = vmul.f32 %v979, %v985
    %v988 = vpack.c.bf16 %v987, %v986
    %v989 = vld [vmem:[#allocation12] sm:$0xf]
    %v990 = vld [vmem:[#allocation12 + $0x4] sm:$0xf]
    %v991 = vld [vmem:[#allocation12 + $0x8] sm:$0xf]
    %v992 = vld [vmem:[#allocation12 + $0xc] sm:$0xf]
    %v993 = vld [vmem:[#allocation12 + $0x10] sm:$0xf]
    %v994 = vld [vmem:[#allocation12 + $0x14] sm:$0xf]
    %v995 = vld [vmem:[#allocation12 + $0x18] sm:$0xf]
    %v996 = vld [vmem:[#allocation12 + $0x1c] sm:$0xf]
    %v997 = vld [vmem:[#allocation12 + $0x20] sm:$0xf]
    %v998 = vld [vmem:[#allocation12 + $0x24] sm:$0xf]
    %v999 = vld [vmem:[#allocation12 + $0x28] sm:$0xf]
    %v1000 = vld [vmem:[#allocation12 + $0x2c] sm:$0xf]
    %v1001 = vld [vmem:[#allocation12 + $0x30] sm:$0xf]
    %v1002 = vld [vmem:[#allocation12 + $0x34] sm:$0xf]
    %v1003 = vld [vmem:[#allocation12 + $0x38] sm:$0xf]
    %v1004 = vld [vmem:[#allocation12 + $0x3c] sm:$0xf]
    %v1005 = vlaneseq
    %v1006 = vshrl.u32 %v1005, 7
    %v1007 = vsub.s32 0, %v1006
    %v1008 = vrot.slane %v865, %v1007
    %v1025 = vunpack.c.l.b16 %v989
    %v1026 = vunpack.c.l.b16 %v990
    %v1027 = vunpack.c.l.b16 %v991
    %v1028 = vunpack.c.l.b16 %v992
    %v1029 = vunpack.c.l.b16 %v993
    %v1030 = vunpack.c.l.b16 %v994
    %v1031 = vunpack.c.l.b16 %v995
    %v1032 = vunpack.c.l.b16 %v996
    %v1033 = vunpack.c.l.b16 %v997
    %v1034 = vunpack.c.l.b16 %v998
    %v1035 = vunpack.c.l.b16 %v999
    %v1036 = vunpack.c.l.b16 %v1000
    %v1037 = vunpack.c.l.b16 %v1001
    %v1038 = vunpack.c.l.b16 %v1002
    %v1039 = vunpack.c.l.b16 %v1003
    %v1040 = vunpack.c.l.b16 %v1004
    %v1041 = vpack.c.b16 %v1026, %v1025
    %v1042 = vpack.c.b16 %v1028, %v1027
    %v1043 = vpack.c.b16 %v1030, %v1029
    %v1044 = vpack.c.b16 %v1032, %v1031
    %v1045 = vpack.c.b16 %v1034, %v1033
    %v1046 = vpack.c.b16 %v1036, %v1035
    %v1047 = vpack.c.b16 %v1038, %v1037
    %v1048 = vpack.c.b16 %v1040, %v1039
    %1057 = vmatprep.subr.bf16.mxu0 0
    %1058 = vmatpush1.bf16.msra.mxu0 %v1048
    %1059 = vmatprep.subr.bf16.mxu0 0
    %1060 = vmatpush1.bf16.msra.mxu0 %v1047
    %1061 = vmatprep.subr.bf16.mxu0 0
    %1062 = vmatpush1.bf16.msra.mxu0 %v1046
    %1063 = vmatprep.subr.bf16.mxu0 0
    %1064 = vmatpush1.bf16.msra.mxu0 %v1045
    %1065 = vmatprep.subr.bf16.mxu0 0
    %1066 = vmatpush1.bf16.msra.mxu0 %v1044
    %1067 = vmatprep.subr.bf16.mxu0 0
    %1068 = vmatpush1.bf16.msra.mxu0 %v1043
    %1069 = vmatprep.subr.bf16.mxu0 0
    %1070 = vmatpush1.bf16.msra.mxu0 %v1042
    %1071 = vmatprep.subr.bf16.mxu0 0
    %1072 = vmatpush1.bf16.msra.mxu0 %v1041
    %1073 = vmatprep.subr.bf16.mxu0 0
    %1074 = vmatpush2.bf16.msra.mxu0 0
    %1075 = vmatprep.subr.bf16.mxu0 0
    %1076 = vmatpush2.bf16.msra.mxu0 0
    %1077 = vmatprep.subr.bf16.mxu0 0
    %1078 = vmatpush2.bf16.msra.mxu0 0
    %1079 = vmatprep.subr.bf16.mxu0 0
    %1080 = vmatpush2.bf16.msra.mxu0 0
    %1081 = vmatprep.subr.bf16.mxu0 0
    %1082 = vmatpush2.bf16.msra.mxu0 0
    %1083 = vmatprep.subr.bf16.mxu0 0
    %1084 = vmatpush2.bf16.msra.mxu0 0
    %1085 = vmatprep.subr.bf16.mxu0 0
    %1086 = vmatpush2.bf16.msra.mxu0 0
    %1087 = vmatprep.subr.bf16.mxu0 0
    %1088 = vmatpush2.bf16.msra.mxu0 0
    %1089 = vmatprep.mubr.bf16.mxu0 0
    %1090 = vmatmul.mubr.bf16.gmra.mxu0 %v988
    %v1091 = vpop.f32.mrf.mxu0
    %v1092 = vadd.f32 %v1008, %v1091
    %v1093 = vpop.f32.mrf.mxu0
    %v1094 = vpop.f32.mrf.mxu0
    %v1095 = vadd.f32 %v1008, %v1094
    %v1096 = vpop.f32.mrf.mxu0
    %1097 = vdwg.mxu0
    %v1098 = vadd.f32 %v1092, %v972
    %v1099 = vadd.f32 %v1095, %v975
    %1100 = vadd.xlane.f32.xlu0 %v1098
    %v1101 = vpop.xlane.xlu0 %1100
    %1102 = vadd.xlane.f32.xlu0 %v1099
    %v1103 = vpop.xlane.xlu0 %1102
    %v1104 = vrcp.pop 128.0
    %v1105 = vmul.f32 %v1101, %v1104
    %v1106 = vmul.f32 %v1103, %v1104
    %v1107 = vsub.f32 %v1098, %v1105
    %v1108 = vsub.f32 %v1099, %v1106
    %v1109 = vmul.f32 %v1107, %v1107
    %v1110 = vmul.f32 %v1108, %v1108
    %1111 = vadd.xlane.f32.xlu0 %v1109
    %v1112 = vpop.xlane.xlu0 %1111
    %1113 = vadd.xlane.f32.xlu0 %v1110
    %v1114 = vpop.xlane.xlu0 %1113
    %v1115 = vmul.f32 %v1112, %v1104
    %v1116 = vmul.f32 %v1114, %v1104
    %v1117 = vadd.f32 %v1115, 1e-05
    %v1118 = vadd.f32 %v1116, 1e-05
    %v1119 = vrsqrt.pop %v1117
    %v1120 = vrsqrt.pop %v1118
    %v1121 = vmul.f32 %v1107, %v1119
    %v1122 = vmul.f32 %v1108, %v1120
    %v1123 = vlaneseq
    %v1124 = vshrl.u32 %v1123, 7
    %v1125 = vsub.s32 0, %v1124
    %v1126 = vrot.slane %v866, %v1125
    %v1127 = vmul.f32 %v1121, %v1126
    %v1128 = vmul.f32 %v1122, %v1126
    %v1129 = vlaneseq
    %v1130 = vshrl.u32 %v1129, 7
    %v1131 = vsub.s32 0, %v1130
    %v1132 = vrot.slane %v867, %v1131
    %v1133 = vadd.f32 %v1127, %v1132
    %v1134 = vadd.f32 %v1128, %v1132
    %s1135 = scalar_lea.vmem [#allocation2], %s863
    %1136 = vst [vmem:[%s1135] sm:$0xff] %v1133
    %1137 = vst [vmem:[%s1135 + $0x8] sm:$0xff] %v1134
    %v1138 = vld [vmem:[#allocation7] sm:$0xf]
    %v1139 = vld [vmem:[#allocation7 + $0x4] sm:$0xf]
    %v1140 = vld [vmem:[%s9] sm:$0x1]
    %v1141 = vld [vmem:[%s9 + $0x1] sm:$0x1]
    %v1142 = vld [vmem:[%s9 + $0x2] sm:$0x1]
    %v1143 = vld [vmem:[%s9 + $0x3] sm:$0x1]
    %v1144 = vld [vmem:[#allocation13] sm:$0xf]
    %v1145 = vld [vmem:[#allocation13 + $0x4] sm:$0xf]
    %v1146 = vld [vmem:[#allocation13 + $0x8] sm:$0xf]
    %v1147 = vld [vmem:[#allocation13 + $0xc] sm:$0xf]
    %v1148 = vld [vmem:[#allocation13 + $0x10] sm:$0xf]
    %v1149 = vld [vmem:[#allocation13 + $0x14] sm:$0xf]
    %v1150 = vld [vmem:[#allocation13 + $0x18] sm:$0xf]
    %v1151 = vld [vmem:[#allocation13 + $0x1c] sm:$0xf]
    %v1152 = vld [vmem:[#allocation13 + $0x20] sm:$0xf]
    %v1153 = vld [vmem:[#allocation13 + $0x24] sm:$0xf]
    %v1154 = vld [vmem:[#allocation13 + $0x28] sm:$0xf]
    %v1155 = vld [vmem:[#allocation13 + $0x2c] sm:$0xf]
    %v1156 = vld [vmem:[#allocation13 + $0x30] sm:$0xf]
    %v1157 = vld [vmem:[#allocation13 + $0x34] sm:$0xf]
    %v1158 = vld [vmem:[#allocation13 + $0x38] sm:$0xf]
    %v1159 = vld [vmem:[#allocation13 + $0x3c] sm:$0xf]
    %v1160 = vlaneseq
    %v1161 = vshrl.u32 %v1160, 7
    %v1162 = vsub.s32 0, %v1161
    %v1163 = vrot.slane %v1140, %v1162
    %v1166 = vunpack.c.l.b16 %v1138
    %v1167 = vunpack.c.l.b16 %v1139
    %v1168 = vpack.c.b16 %v1167, %v1166
    %v1186 = vunpack.c.l.b16 %v1144
    %v1187 = vunpack.c.l.b16 %v1145
    %v1188 = vunpack.c.l.b16 %v1146
    %v1189 = vunpack.c.l.b16 %v1147
    %v1190 = vunpack.c.l.b16 %v1148
    %v1191 = vunpack.c.l.b16 %v1149
    %v1192 = vunpack.c.l.b16 %v1150
    %v1193 = vunpack.c.l.b16 %v1151
    %v1194 = vunpack.c.l.b16 %v1152
    %v1195 = vunpack.c.l.b16 %v1153
    %v1196 = vunpack.c.l.b16 %v1154
    %v1197 = vunpack.c.l.b16 %v1155
    %v1198 = vunpack.c.l.b16 %v1156
    %v1199 = vunpack.c.l.b16 %v1157
    %v1200 = vunpack.c.l.b16 %v1158
    %v1201 = vunpack.c.l.b16 %v1159
    %v1202 = vpack.c.b16 %v1187, %v1186
    %v1203 = vpack.c.b16 %v1189, %v1188
    %v1204 = vpack.c.b16 %v1191, %v1190
    %v1205 = vpack.c.b16 %v1193, %v1192
    %v1206 = vpack.c.b16 %v1195, %v1194
    %v1207 = vpack.c.b16 %v1197, %v1196
    %v1208 = vpack.c.b16 %v1199, %v1198
    %v1209 = vpack.c.b16 %v1201, %v1200
    %1218 = vmatprep.subr.bf16.mxu0 0
    %1219 = vmatpush1.bf16.msra.mxu0 %v1209
    %1220 = vmatprep.subr.bf16.mxu0 0
    %1221 = vmatpush1.bf16.msra.mxu0 %v1208
    %1222 = vmatprep.subr.bf16.mxu0 0
    %1223 = vmatpush1.bf16.msra.mxu0 %v1207
    %1224 = vmatprep.subr.bf16.mxu0 0
    %1225 = vmatpush1.bf16.msra.mxu0 %v1206
    %1226 = vmatprep.subr.bf16.mxu0 0
    %1227 = vmatpush1.bf16.msra.mxu0 %v1205
    %1228 = vmatprep.subr.bf16.mxu0 0
    %1229 = vmatpush1.bf16.msra.mxu0 %v1204
    %1230 = vmatprep.subr.bf16.mxu0 0
    %1231 = vmatpush1.bf16.msra.mxu0 %v1203
    %1232 = vmatprep.subr.bf16.mxu0 0
    %1233 = vmatpush1.bf16.msra.mxu0 %v1202
    %1234 = vmatprep.subr.bf16.mxu0 0
    %1235 = vmatpush2.bf16.msra.mxu0 0
    %1236 = vmatprep.subr.bf16.mxu0 0
    %1237 = vmatpush2.bf16.msra.mxu0 0
    %1238 = vmatprep.subr.bf16.mxu0 0
    %1239 = vmatpush2.bf16.msra.mxu0 0
    %1240 = vmatprep.subr.bf16.mxu0 0
    %1241 = vmatpush2.bf16.msra.mxu0 0
    %1242 = vmatprep.subr.bf16.mxu0 0
    %1243 = vmatpush2.bf16.msra.mxu0 0
    %1244 = vmatprep.subr.bf16.mxu0 0
    %1245 = vmatpush2.bf16.msra.mxu0 0
    %1246 = vmatprep.subr.bf16.mxu0 0
    %1247 = vmatpush2.bf16.msra.mxu0 0
    %1248 = vmatprep.subr.bf16.mxu0 0
    %1249 = vmatpush2.bf16.msra.mxu0 0
    %1250 = vmatprep.mubr.bf16.mxu0 0
    %1251 = vmatmul.mubr.bf16.gmra.mxu0 %v1168
    %v1252 = vpop.f32.mrf.mxu0
    %v1253 = vadd.f32 %v1163, %v1252
    %v1254 = vpop.f32.mrf.mxu0
    %v1255 = vpop.f32.mrf.mxu0
    %v1256 = vadd.f32 %v1163, %v1255
    %v1257 = vpop.f32.mrf.mxu0
    %1258 = vdwg.mxu0
    %v1259 = vmul.f32 %v1253, 0.5
    %v1260 = vmul.f32 %v1256, 0.5
    %v1261 = vmul.f32 %v1253, 0.70710677
    %v1262 = vmul.f32 %v1256, 0.70710677
    %v1263 = verf.f32.pop %v1261
    %v1264 = verf.f32.pop %v1262
    %v1265 = vadd.f32 %v1263, 1.0
    %v1266 = vadd.f32 %v1264, 1.0
    %v1267 = vmul.f32 %v1259, %v1265
    %v1268 = vmul.f32 %v1260, %v1266
    %v1269 = vpack.c.bf16 %v1268, %v1267
    %v1270 = vld [vmem:[#allocation15] sm:$0xf]
    %v1271 = vld [vmem:[#allocation15 + $0x4] sm:$0xf]
    %v1272 = vld [vmem:[#allocation15 + $0x8] sm:$0xf]
    %v1273 = vld [vmem:[#allocation15 + $0xc] sm:$0xf]
    %v1274 = vld [vmem:[#allocation15 + $0x10] sm:$0xf]
    %v1275 = vld [vmem:[#allocation15 + $0x14] sm:$0xf]
    %v1276 = vld [vmem:[#allocation15 + $0x18] sm:$0xf]
    %v1277 = vld [vmem:[#allocation15 + $0x1c] sm:$0xf]
    %v1278 = vld [vmem:[#allocation15 + $0x20] sm:$0xf]
    %v1279 = vld [vmem:[#allocation15 + $0x24] sm:$0xf]
    %v1280 = vld [vmem:[#allocation15 + $0x28] sm:$0xf]
    %v1281 = vld [vmem:[#allocation15 + $0x2c] sm:$0xf]
    %v1282 = vld [vmem:[#allocation15 + $0x30] sm:$0xf]
    %v1283 = vld [vmem:[#allocation15 + $0x34] sm:$0xf]
    %v1284 = vld [vmem:[#allocation15 + $0x38] sm:$0xf]
    %v1285 = vld [vmem:[#allocation15 + $0x3c] sm:$0xf]
    %v1286 = vlaneseq
    %v1287 = vshrl.u32 %v1286, 7
    %v1288 = vsub.s32 0, %v1287
    %v1289 = vrot.slane %v1141, %v1288
    %v1306 = vunpack.c.l.b16 %v1270
    %v1307 = vunpack.c.l.b16 %v1271
    %v1308 = vunpack.c.l.b16 %v1272
    %v1309 = vunpack.c.l.b16 %v1273
    %v1310 = vunpack.c.l.b16 %v1274
    %v1311 = vunpack.c.l.b16 %v1275
    %v1312 = vunpack.c.l.b16 %v1276
    %v1313 = vunpack.c.l.b16 %v1277
    %v1314 = vunpack.c.l.b16 %v1278
    %v1315 = vunpack.c.l.b16 %v1279
    %v1316 = vunpack.c.l.b16 %v1280
    %v1317 = vunpack.c.l.b16 %v1281
    %v1318 = vunpack.c.l.b16 %v1282
    %v1319 = vunpack.c.l.b16 %v1283
    %v1320 = vunpack.c.l.b16 %v1284
    %v1321 = vunpack.c.l.b16 %v1285
    %v1322 = vpack.c.b16 %v1307, %v1306
    %v1323 = vpack.c.b16 %v1309, %v1308
    %v1324 = vpack.c.b16 %v1311, %v1310
    %v1325 = vpack.c.b16 %v1313, %v1312
    %v1326 = vpack.c.b16 %v1315, %v1314
    %v1327 = vpack.c.b16 %v1317, %v1316
    %v1328 = vpack.c.b16 %v1319, %v1318
    %v1329 = vpack.c.b16 %v1321, %v1320
    %1338 = vmatprep.subr.bf16.mxu0 0
    %1339 = vmatpush1.bf16.msra.mxu0 %v1329
    %1340 = vmatprep.subr.bf16.mxu0 0
    %1341 = vmatpush1.bf16.msra.mxu0 %v1328
    %1342 = vmatprep.subr.bf16.mxu0 0
    %1343 = vmatpush1.bf16.msra.mxu0 %v1327
    %1344 = vmatprep.subr.bf16.mxu0 0
    %1345 = vmatpush1.bf16.msra.mxu0 %v1326
    %1346 = vmatprep.subr.bf16.mxu0 0
    %1347 = vmatpush1.bf16.msra.mxu0 %v1325
    %1348 = vmatprep.subr.bf16.mxu0 0
    %1349 = vmatpush1.bf16.msra.mxu0 %v1324
    %1350 = vmatprep.subr.bf16.mxu0 0
    %1351 = vmatpush1.bf16.msra.mxu0 %v1323
    %1352 = vmatprep.subr.bf16.mxu0 0
    %1353 = vmatpush1.bf16.msra.mxu0 %v1322
    %1354 = vmatprep.subr.bf16.mxu0 0
    %1355 = vmatpush2.bf16.msra.mxu0 0
    %1356 = vmatprep.subr.bf16.mxu0 0
    %1357 = vmatpush2.bf16.msra.mxu0 0
    %1358 = vmatprep.subr.bf16.mxu0 0
    %1359 = vmatpush2.bf16.msra.mxu0 0
    %1360 = vmatprep.subr.bf16.mxu0 0
    %1361 = vmatpush2.bf16.msra.mxu0 0
    %1362 = vmatprep.subr.bf16.mxu0 0
    %1363 = vmatpush2.bf16.msra.mxu0 0
    %1364 = vmatprep.subr.bf16.mxu0 0
    %1365 = vmatpush2.bf16.msra.mxu0 0
    %1366 = vmatprep.subr.bf16.mxu0 0
    %1367 = vmatpush2.bf16.msra.mxu0 0
    %1368 = vmatprep.subr.bf16.mxu0 0
    %1369 = vmatpush2.bf16.msra.mxu0 0
    %1370 = vmatprep.mubr.bf16.mxu0 0
    %1371 = vmatmul.mubr.bf16.gmra.mxu0 %v1269
    %v1372 = vpop.f32.mrf.mxu0
    %v1373 = vadd.f32 %v1289, %v1372
    %v1374 = vpop.f32.mrf.mxu0
    %v1375 = vpop.f32.mrf.mxu0
    %v1376 = vadd.f32 %v1289, %v1375
    %v1377 = vpop.f32.mrf.mxu0
    %1378 = vdwg.mxu0
    %v1379 = vadd.f32 %v1373, %v1253
    %v1380 = vadd.f32 %v1376, %v1256
    %1381 = vadd.xlane.f32.xlu0 %v1379
    %v1382 = vpop.xlane.xlu0 %1381
    %1383 = vadd.xlane.f32.xlu0 %v1380
    %v1384 = vpop.xlane.xlu0 %1383
    %v1385 = vmul.f32 %v1382, %v1104
    %v1386 = vmul.f32 %v1384, %v1104
    %v1387 = vsub.f32 %v1379, %v1385
    %v1388 = vsub.f32 %v1380, %v1386
    %v1389 = vmul.f32 %v1387, %v1387
    %v1390 = vmul.f32 %v1388, %v1388
    %1391 = vadd.xlane.f32.xlu0 %v1389
    %v1392 = vpop.xlane.xlu0 %1391
    %1393 = vadd.xlane.f32.xlu0 %v1390
    %v1394 = vpop.xlane.xlu0 %1393
    %v1395 = vmul.f32 %v1392, %v1104
    %v1396 = vmul.f32 %v1394, %v1104
    %v1397 = vadd.f32 %v1395, 1e-05
    %v1398 = vadd.f32 %v1396, 1e-05
    %v1399 = vrsqrt.pop %v1397
    %v1400 = vrsqrt.pop %v1398
    %v1401 = vmul.f32 %v1387, %v1399
    %v1402 = vmul.f32 %v1388, %v1400
    %v1403 = vlaneseq
    %v1404 = vshrl.u32 %v1403, 7
    %v1405 = vsub.s32 0, %v1404
    %v1406 = vrot.slane %v1142, %v1405
    %v1407 = vmul.f32 %v1401, %v1406
    %v1408 = vmul.f32 %v1402, %v1406
    %v1409 = vlaneseq
    %v1410 = vshrl.u32 %v1409, 7
    %v1411 = vsub.s32 0, %v1410
    %v1412 = vrot.slane %v1143, %v1411
    %v1413 = vadd.f32 %v1407, %v1412
    %v1414 = vadd.f32 %v1408, %v1412
    %s1415 = scalar_lea.vmem [#allocation3], %s863
    %1416 = vst [vmem:[%s1415] sm:$0xff] %v1413
    %1417 = vst [vmem:[%s1415 + $0x8] sm:$0xff] %v1414
    %p1418 = scmp.eq.s32.totalorder 0, 0
    // Predicated region
    $region70: #{tpu_custom_call.1} parent=1 // pred_check
      %p1419 = pneg %p1418
    $region71: #{tpu_custom_call.1} parent=1 // pred_check_branch
      %1421 = sbr.rel (%p1419) target = $region73
    $region72: #{tpu_custom_call.1} parent=1 // pred_region
      %v1422 = vld [vmem:[#allocation2] sm:$0xff]
      %v1423 = vld [vmem:[#allocation2 + $0x8] sm:$0xff]
      %v1424 = vld [vmem:[#allocation3] sm:$0xff]
      %v1425 = vld [vmem:[#allocation3 + $0x8] sm:$0xff]
      %1426 = vmatprep.subr.mxu0 0.0
      %1427 = vmatpush1.xpose.msra.mxu0 0.0
      %1428 = vmatprep.subr.mxu0 0.0
      %1429 = vmatpush1.xpose.msra.mxu0 0.0
      %1430 = vmatprep.subr.mxu0 0.0
      %1431 = vmatpush1.xpose.msra.mxu0 0.0
      %1432 = vmatprep.subr.mxu0 0.0
      %1433 = vmatpush1.xpose.msra.mxu0 0.0
      %1434 = vmatprep.subr.mxu0 0.0
      %1435 = vmatpush1.xpose.msra.mxu0 0.0
      %1436 = vmatprep.subr.mxu0 0.0
      %1437 = vmatpush1.xpose.msra.mxu0 0.0
      %1438 = vmatprep.subr.mxu0 0.0
      %1439 = vmatpush1.xpose.msra.mxu0 0.0
      %1440 = vmatprep.subr.mxu0 0.0
      %1441 = vmatpush1.xpose.msra.mxu0 0.0
      %1442 = vmatprep.subr.mxu0 0.0
      %1443 = vmatpush1.xpose.msra.mxu0 0.0
      %1444 = vmatprep.subr.mxu0 0.0
      %1445 = vmatpush1.xpose.msra.mxu0 0.0
      %1446 = vmatprep.subr.mxu0 0.0
      %1447 = vmatpush1.xpose.msra.mxu0 0.0
      %1448 = vmatprep.subr.mxu0 0.0
      %1449 = vmatpush1.xpose.msra.mxu0 0.0
      %1450 = vmatprep.subr.mxu0 0.0
      %1451 = vmatpush1.xpose.msra.mxu0 0.0
      %1452 = vmatprep.subr.mxu0 0.0
      %1453 = vmatpush1.xpose.msra.mxu0 0.0
      %1454 = vmatprep.subr.mxu0 0.0
      %1455 = vmatpush1.xpose.msra.mxu0 %v1423
      %1456 = vmatprep.subr.mxu0 0.0
      %1457 = vmatpush1.xpose.msra.mxu0 %v1422
      %1458 = vmatprep.subr.mxu0 0.0
      %1459 = vmatpush2.xpose.msra.mxu0 0.0
      %1460 = vmatprep.subr.mxu0 0.0
      %1461 = vmatpush2.xpose.msra.mxu0 0.0
      %1462 = vmatprep.subr.mxu0 0.0
      %1463 = vmatpush2.xpose.msra.mxu0 0.0
      %1464 = vmatprep.subr.mxu0 0.0
      %1465 = vmatpush2.xpose.msra.mxu0 0.0
      %1466 = vmatprep.subr.mxu0 0.0
      %1467 = vmatpush2.xpose.msra.mxu0 0.0
      %1468 = vmatprep.subr.mxu0 0.0
      %1469 = vmatpush2.xpose.msra.mxu0 0.0
      %1470 = vmatprep.subr.mxu0 0.0
      %1471 = vmatpush2.xpose.msra.mxu0 0.0
      %1472 = vmatprep.subr.mxu0 0.0
      %1473 = vmatpush2.xpose.msra.mxu0 0.0
      %1474 = vmatprep.subr.mxu0 0.0
      %1475 = vmatpush2.xpose.msra.mxu0 0.0
      %1476 = vmatprep.subr.mxu0 0.0
      %1477 = vmatpush2.xpose.msra.mxu0 0.0
      %1478 = vmatprep.subr.mxu0 0.0
      %1479 = vmatpush2.xpose.msra.mxu0 0.0
      %1480 = vmatprep.subr.mxu0 0.0
      %1481 = vmatpush2.xpose.msra.mxu0 0.0
      %1482 = vmatprep.subr.mxu0 0.0
      %1483 = vmatpush2.xpose.msra.mxu0 0.0
      %1484 = vmatprep.subr.mxu0 0.0
      %1485 = vmatpush2.xpose.msra.mxu0 0.0
      %1486 = vmatprep.subr.mxu0 0.0
      %1487 = vmatpush2.xpose.msra.mxu0 0.0
      %1488 = vmatprep.subr.mxu0 0.0
      %1489 = vmatpush2.xpose.msra.mxu0 0.0
      %1490 = vmatprep.mubr.f32.mxu0 0.0
      %1491 = vmatmul.mubr.f32.gmra.mxu0 %v1424
      %v1492 = vpop.f32.mrf.mxu0
      %v1493 = vadd.f32 0.0, %v1492
      %v1494 = vpop.f32.mrf.mxu0
      %1495 = vmatprep.mubr.f32.mxu0 0.0
      %1496 = vmatmul.mubr.f32.gmra.mxu0 %v1425
      %v1497 = vpop.f32.mrf.mxu0
      %v1498 = vadd.f32 0.0, %v1497
      %v1499 = vpop.f32.mrf.mxu0
      %1500 = vdwg.mxu0
      %1501 = vmatprep.subr.mxu0 0.0
      %1502 = vmatpush1.xpose.msra.mxu0 0.0
      %1503 = vmatprep.subr.mxu0 0.0
      %1504 = vmatpush1.xpose.msra.mxu0 0.0
      %1505 = vmatprep.subr.mxu0 0.0
      %1506 = vmatpush1.xpose.msra.mxu0 0.0
      %1507 = vmatprep.subr.mxu0 0.0
      %1508 = vmatpush1.xpose.msra.mxu0 0.0
      %1509 = vmatprep.subr.mxu0 0.0
      %1510 = vmatpush1.xpose.msra.mxu0 0.0
      %1511 = vmatprep.subr.mxu0 0.0
      %1512 = vmatpush1.xpose.msra.mxu0 0.0
      %1513 = vmatprep.subr.mxu0 0.0
      %1514 = vmatpush1.xpose.msra.mxu0 0.0
      %1515 = vmatprep.subr.mxu0 0.0
      %1516 = vmatpush1.xpose.msra.mxu0 0.0
      %1517 = vmatprep.subr.mxu0 0.0
      %1518 = vmatpush1.xpose.msra.mxu0 0.0
      %1519 = vmatprep.subr.mxu0 0.0
      %1520 = vmatpush1.xpose.msra.mxu0 0.0
      %1521 = vmatprep.subr.mxu0 0.0
      %1522 = vmatpush1.xpose.msra.mxu0 0.0
      %1523 = vmatprep.subr.mxu0 0.0
      %1524 = vmatpush1.xpose.msra.mxu0 0.0
      %1525 = vmatprep.subr.mxu0 0.0
      %1526 = vmatpush1.xpose.msra.mxu0 0.0
      %1527 = vmatprep.subr.mxu0 0.0
      %1528 = vmatpush1.xpose.msra.mxu0 0.0
      %1529 = vmatprep.subr.mxu0 0.0
      %1530 = vmatpush1.xpose.msra.mxu0 %v1425
      %1531 = vmatprep.subr.mxu0 0.0
      %1532 = vmatpush1.xpose.msra.mxu0 %v1424
      %1533 = vmatprep.subr.mxu0 0.0
      %1534 = vmatpush2.xpose.msra.mxu0 0.0
      %1535 = vmatprep.subr.mxu0 0.0
      %1536 = vmatpush2.xpose.msra.mxu0 0.0
      %1537 = vmatprep.subr.mxu0 0.0
      %1538 = vmatpush2.xpose.msra.mxu0 0.0
      %1539 = vmatprep.subr.mxu0 0.0
      %1540 = vmatpush2.xpose.msra.mxu0 0.0
      %1541 = vmatprep.subr.mxu0 0.0
      %1542 = vmatpush2.xpose.msra.mxu0 0.0
      %1543 = vmatprep.subr.mxu0 0.0
      %1544 = vmatpush2.xpose.msra.mxu0 0.0
      %1545 = vmatprep.subr.mxu0 0.0
      %1546 = vmatpush2.xpose.msra.mxu0 0.0
      %1547 = vmatprep.subr.mxu0 0.0
      %1548 = vmatpush2.xpose.msra.mxu0 0.0
      %1549 = vmatprep.subr.mxu0 0.0
      %1550 = vmatpush2.xpose.msra.mxu0 0.0
      %1551 = vmatprep.subr.mxu0 0.0
      %1552 = vmatpush2.xpose.msra.mxu0 0.0
      %1553 = vmatprep.subr.mxu0 0.0
      %1554 = vmatpush2.xpose.msra.mxu0 0.0
      %1555 = vmatprep.subr.mxu0 0.0
      %1556 = vmatpush2.xpose.msra.mxu0 0.0
      %1557 = vmatprep.subr.mxu0 0.0
      %1558 = vmatpush2.xpose.msra.mxu0 0.0
      %1559 = vmatprep.subr.mxu0 0.0
      %1560 = vmatpush2.xpose.msra.mxu0 0.0
      %1561 = vmatprep.subr.mxu0 0.0
      %1562 = vmatpush2.xpose.msra.mxu0 0.0
      %1563 = vmatprep.subr.mxu0 0.0
      %1564 = vmatpush2.xpose.msra.mxu0 0.0
      %1565 = vmatprep.mubr.f32.mxu0 0.0
      %1566 = vmatmul.mubr.f32.gmra.mxu0 %v1424
      %v1567 = vpop.f32.mrf.mxu0
      %v1568 = vadd.f32 0.0, %v1567
      %v1569 = vpop.f32.mrf.mxu0
      %1570 = vmatprep.mubr.f32.mxu0 0.0
      %1571 = vmatmul.mubr.f32.gmra.mxu0 %v1425
      %v1572 = vpop.f32.mrf.mxu0
      %v1573 = vadd.f32 0.0, %v1572
      %v1574 = vpop.f32.mrf.mxu0
      %1575 = vdwg.mxu0
      %1576 = vmatprep.subr.mxu0 0.0
      %1577 = vmatpush1.xpose.msra.mxu0 0.0
      %1578 = vmatprep.subr.mxu0 0.0
      %1579 = vmatpush1.xpose.msra.mxu0 0.0
      %1580 = vmatprep.subr.mxu0 0.0
      %1581 = vmatpush1.xpose.msra.mxu0 0.0
      %1582 = vmatprep.subr.mxu0 0.0
      %1583 = vmatpush1.xpose.msra.mxu0 0.0
      %1584 = vmatprep.subr.mxu0 0.0
      %1585 = vmatpush1.xpose.msra.mxu0 0.0
      %1586 = vmatprep.subr.mxu0 0.0
      %1587 = vmatpush1.xpose.msra.mxu0 0.0
      %1588 = vmatprep.subr.mxu0 0.0
      %1589 = vmatpush1.xpose.msra.mxu0 0.0
      %1590 = vmatprep.subr.mxu0 0.0
      %1591 = vmatpush1.xpose.msra.mxu0 0.0
      %1592 = vmatprep.subr.mxu0 0.0
      %1593 = vmatpush1.xpose.msra.mxu0 0.0
      %1594 = vmatprep.subr.mxu0 0.0
      %1595 = vmatpush1.xpose.msra.mxu0 0.0
      %1596 = vmatprep.subr.mxu0 0.0
      %1597 = vmatpush1.xpose.msra.mxu0 0.0
      %1598 = vmatprep.subr.mxu0 0.0
      %1599 = vmatpush1.xpose.msra.mxu0 0.0
      %1600 = vmatprep.subr.mxu0 0.0
      %1601 = vmatpush1.xpose.msra.mxu0 0.0
      %1602 = vmatprep.subr.mxu0 0.0
      %1603 = vmatpush1.xpose.msra.mxu0 0.0
      %1604 = vmatprep.subr.mxu0 0.0
      %1605 = vmatpush1.xpose.msra.mxu0 %v1423
      %1606 = vmatprep.subr.mxu0 0.0
      %1607 = vmatpush1.xpose.msra.mxu0 %v1422
      %1608 = vmatprep.subr.mxu0 0.0
      %1609 = vmatpush2.xpose.msra.mxu0 0.0
      %1610 = vmatprep.subr.mxu0 0.0
      %1611 = vmatpush2.xpose.msra.mxu0 0.0
      %1612 = vmatprep.subr.mxu0 0.0
      %1613 = vmatpush2.xpose.msra.mxu0 0.0
      %1614 = vmatprep.subr.mxu0 0.0
      %1615 = vmatpush2.xpose.msra.mxu0 0.0
      %1616 = vmatprep.subr.mxu0 0.0
      %1617 = vmatpush2.xpose.msra.mxu0 0.0
      %1618 = vmatprep.subr.mxu0 0.0
      %1619 = vmatpush2.xpose.msra.mxu0 0.0
      %1620 = vmatprep.subr.mxu0 0.0
      %1621 = vmatpush2.xpose.msra.mxu0 0.0
      %1622 = vmatprep.subr.mxu0 0.0
      %1623 = vmatpush2.xpose.msra.mxu0 0.0
      %1624 = vmatprep.subr.mxu0 0.0
      %1625 = vmatpush2.xpose.msra.mxu0 0.0
      %1626 = vmatprep.subr.mxu0 0.0
      %1627 = vmatpush2.xpose.msra.mxu0 0.0
      %1628 = vmatprep.subr.mxu0 0.0
      %1629 = vmatpush2.xpose.msra.mxu0 0.0
      %1630 = vmatprep.subr.mxu0 0.0
      %1631 = vmatpush2.xpose.msra.mxu0 0.0
      %1632 = vmatprep.subr.mxu0 0.0
      %1633 = vmatpush2.xpose.msra.mxu0 0.0
      %1634 = vmatprep.subr.mxu0 0.0
      %1635 = vmatpush2.xpose.msra.mxu0 0.0
      %1636 = vmatprep.subr.mxu0 0.0
      %1637 = vmatpush2.xpose.msra.mxu0 0.0
      %1638 = vmatprep.subr.mxu0 0.0
      %1639 = vmatpush2.xpose.msra.mxu0 0.0
      %1640 = vmatprep.mubr.f32.mxu0 0.0
      %1641 = vmatmul.mubr.f32.gmra.mxu0 %v1422
      %v1642 = vpop.f32.mrf.mxu0
      %v1643 = vadd.f32 %v1568, %v1642
      %v1644 = vpop.f32.mrf.mxu0
      %1645 = vmatprep.mubr.f32.mxu0 0.0
      %1646 = vmatmul.mubr.f32.gmra.mxu0 %v1423
      %v1647 = vpop.f32.mrf.mxu0
      %v1648 = vadd.f32 %v1573, %v1647
      %v1649 = vpop.f32.mrf.mxu0
      %1650 = vdwg.mxu0
      %v1651 = vmul.f32 %v1643, 0.5
      %v1652 = vmul.f32 %v1648, 0.5
      %vm1653 = vcmask 130048
      %v1654 = vsel %vm1653, %v1651, -inf
      %1655 = vmax.xlane.f32.xlu0 %v1654
      %v1656 = vpop.xlane.xlu0 %1655
      %v1657 = vsel %vm1653, %v1652, -inf
      %1658 = vmax.xlane.f32.xlu0 %v1657
      %v1659 = vpop.xlane.xlu0 %1658
      %v1660 = vsub.f32 %v1651, %v1656
      %v1661 = vsub.f32 %v1652, %v1659
      %v1662 = vmul.f32 %v1660, 1.442695
      %v1663 = vpow.pop %v1662
      %v1664 = vmul.f32 %v1661, 1.442695
      %v1665 = vpow.pop %v1664
      %v1666 = vsel %vm1653, %v1663, 0.0
      %1667 = vadd.xlane.f32.xlu0 %v1666
      %v1668 = vpop.xlane.xlu0 %1667
      %v1669 = vsel %vm1653, %v1665, 0.0
      %1670 = vadd.xlane.f32.xlu0 %v1669
      %v1671 = vpop.xlane.xlu0 %1670
      %v1672 = vrcp.pop %v1668
      %v1673 = vmul.f32 %v1663, %v1672
      %v1674 = vrcp.pop %v1671
      %v1675 = vmul.f32 %v1665, %v1674
      %v1676 = vsub.f32 0.0, %v1673
      %v1677 = vsub.f32 0.0, %v1675
      %v1678 = vsel %vm1653, %v1493, -inf
      %1679 = vmax.xlane.f32.xlu0 %v1678
      %v1680 = vpop.xlane.xlu0 %1679
      %v1681 = vsel %vm1653, %v1498, -inf
      %1682 = vmax.xlane.f32.xlu0 %v1681
      %v1683 = vpop.xlane.xlu0 %1682
      %v1684 = vsub.f32 %v1493, %v1680
      %v1685 = vsub.f32 %v1498, %v1683
      %v1686 = vmul.f32 %v1684, 1.442695
      %v1687 = vpow.pop %v1686
      %v1688 = vmul.f32 %v1685, 1.442695
      %v1689 = vpow.pop %v1688
      %v1690 = vsel %vm1653, %v1687, 0.0
      %1691 = vadd.xlane.f32.xlu0 %v1690
      %v1692 = vpop.xlane.xlu0 %1691
      %v1693 = vsel %vm1653, %v1689, 0.0
      %1694 = vadd.xlane.f32.xlu0 %v1693
      %v1695 = vpop.xlane.xlu0 %1694
      %v1696 = vlog2.pop %v1692
      %v1697 = vmul.f32 %v1696, 0.6931472
      %v1698 = vlog2.pop %v1695
      %v1699 = vmul.f32 %v1698, 0.6931472
      %v1700 = vsub.f32 %v1684, %v1697
      %v1701 = vsub.f32 %v1685, %v1699
      %v1702 = vmax.f32 %v1678, %v1681
      %v1703 = vrot.slane %v1702, 4
      %v1704 = vmax.f32 %v1702, %v1703
      %v1705 = vrot.slane %v1704, 2
      %v1706 = vmax.f32 %v1704, %v1705
      %v1707 = vrot.slane %v1706, 1
      %v1708 = vmax.f32 %v1706, %v1707
      %v1709 = vsub.f32 %v1493, %v1708
      %v1710 = vsub.f32 %v1498, %v1708
      %v1711 = vmul.f32 %v1709, 1.442695
      %v1712 = vpow.pop %v1711
      %v1713 = vmul.f32 %v1710, 1.442695
      %v1714 = vpow.pop %v1713
      %v1715 = vsel %vm1653, %v1712, 0.0
      %v1716 = vsel %vm1653, %v1714, 0.0
      %v1717 = vadd.f32 %v1715, %v1716
      %v1718 = vrot.slane %v1717, 4
      %v1719 = vadd.f32 %v1717, %v1718
      %v1720 = vrot.slane %v1719, 2
      %v1721 = vadd.f32 %v1719, %v1720
      %v1722 = vrot.slane %v1721, 1
      %v1723 = vadd.f32 %v1721, %v1722
      %v1724 = vlog2.pop %v1723
      %v1725 = vmul.f32 %v1724, 0.6931472
      %v1726 = vsub.f32 %v1709, %v1725
      %v1727 = vsub.f32 %v1710, %v1725
      %v1728 = vadd.f32 %v1700, %v1726
      %v1729 = vadd.f32 %v1701, %v1727
      %v1730 = vmul.f32 %v1676, %v1728
      %v1731 = vmul.f32 %v1677, %v1729
      %v1732 = vsel %vm1653, %v1730, 0.0
      %v1733 = vsel %vm1653, %v1731, 0.0
      %v1734 = vadd.f32 %v1732, %v1733
      %1735 = vadd.xlane.f32.xlu0 %v1734
      %v1736 = vpop.xlane.xlu0 %1735
      %v1737 = vrot.slane %v1736, 4
      %v1738 = vadd.f32 %v1736, %v1737
      %v1739 = vrot.slane %v1738, 2
      %v1740 = vadd.f32 %v1738, %v1739
      %v1741 = vrot.slane %v1740, 1
      %v1742 = vadd.f32 %v1740, %v1741
      %s1743 = vtos %v1742
      %v1744 = vstv %s1743
      %v1745 = vmul.f32 %v1744, 0.03125
      %vm1746 = vcmask 0
      %1747 = vst.msk [vmem:[#allocation16] sm:$0x1] %vm1746, %v1745
    $region73: #{tpu_custom_call.1} parent=1 // pred_fallthru
      _
    // Predicated region
    $region74: #{tpu_custom_call.1} parent=1 // pred_check
      _
    $region75: #{tpu_custom_call.1} parent=1 // pred_check_branch
      %1749 = sbr.rel (0) target = $region77
    $region76: #{tpu_custom_call.1} parent=1 // pred_region
      %s1751 = ssub.s32 16, 16
      %1752 = vsyncadd [#allocation6], %s1751
      %s1754 = sshll.u32 [#allocation16], 4
      %s1755 = int_to_ptr.vmem [resolvable:$true] %s1754
      %1757 = dma.vmem_to_hbm [thread:$0]  %s1755, 16, %s10, [#allocation6]
    $region77: #{tpu_custom_call.1} parent=1 // pred_fallthru
      _
    // Predicated region
    $region78: #{tpu_custom_call.1} parent=1 // pred_check
      _
    $region79: #{tpu_custom_call.1} parent=1 // pred_check_branch
      %1759 = sbr.rel (0) target = $region81
    $region80: #{tpu_custom_call.1} parent=1 // pred_region
      %1760 = dma.done [#allocation6], 16
    $region81: #{tpu_custom_call.1} parent=1 // pred_fallthru
      _
    %1761 = vsyncpa [#allocation5], 1
    %1762 = vsyncpa [#allocation8], 1
    %1763 = vsyncpa [#allocation11], 1
    %1764 = vsyncpa [#allocation14], 1
    %1765 = vsyncpa [#allocation6], 1

</llo_original>
